<compile_context>
chip_gen: v6e
topology: v6e:2x2x1
jax: 0.10.0
libtpu: 0.0.40
codegen_flags: <defaults>
</compile_context>

<pallas_src>
import math

import jax
import jax.numpy as jnp
from jax.experimental import pallas as pl
from jax.experimental.pallas import tpu as pltpu

VMEM_SPEC = pl.BlockSpec(memory_space=pltpu.MemorySpace.VMEM)
GW = 128          # lane width of one gate section / of the packed hidden state
STATIC_OFF = 16   # lane offset of the static features in the head vector
BIAS_LANE = 127   # constant-1 lane carrying the folded head bias


# ----------------------------------------------------------------------------
# Fused Pallas kernel: packed recurrence (4 streams, block-diagonal) + head.
# ----------------------------------------------------------------------------
def fused_rnn_exp_decay_kernel(gi_ref, dec_ref, wh_ref, bh_ref, sv_ref,
                               whead_ref, out_ref):
    """Refs (all whole-array VMEM):
      gi_ref   [T, Bp, 3*GW]  staged input projections (+merged biases),
                              lanes: [r | z | n] sections, streams at their
                              hidden-lane offsets, backward streams already
                              time-reversed.
      dec_ref  [T, Bp, GW]    staged per-step decay factors (same layout).
      wh_ref   [GW, 3*GW]     block-diagonal recurrent weight (zero pad rows).
      bh_ref   [1, 3*GW]      b_hn in the n section, zeros elsewhere.
      sv_ref   [Bp, GW]       static features at lanes STATIC_OFF.., 1.0 at
                              BIAS_LANE, zeros elsewhere.
      whead_ref[GW, GW]       folded fc_dp/fc_cp/fc_final weight (column 0).
      out_ref  [Bp, GW]       lane-dense output slab; wrapper reads [:, 0].
    """
    T, Bp, _ = gi_ref.shape
    h = jnp.zeros((Bp, GW), jnp.float32)

    # T is small & static -> fully unrolled; per-iteration ref loads keep live
    # ranges bounded.  (For large T switch to lax.fori_loop(..., unroll=True).)
    for t in range(T):
        gi = gi_ref[t]                       # [Bp, 3*GW]  (tile-aligned load)
        dec = dec_ref[t]                     # [Bp, GW]
        w_h = wh_ref[...]
        b_h = bh_ref[...]

        hd = h * dec                         # exponential decay
        gh = jnp.dot(hd, w_h, preferred_element_type=jnp.float32) + b_h
        # r|z gates in one sigmoid (2 vregs), n gate in one tanh (1 vreg).
        rz = jax.nn.sigmoid(gi[:, :2 * GW] + gh[:, :2 * GW])
        r = rz[:, :GW]
        z = rz[:, GW:2 * GW]
        n = jnp.tanh(gi[:, 2 * GW:] + r * gh[:, 2 * GW:])
        h = (1.0 - z) * n + z * hd

    # Fused head: (h ++ static ++ 1) @ folded weight, one MXU dot.
    hv = h + sv_ref[...]
    out_ref[...] = jnp.dot(hv, whead_ref[...],
                           preferred_element_type=jnp.float32)


# ----------------------------------------------------------------------------
# JAX wrapper (jitted): embedding gather, time deltas, packed staging, one
# pallas_call.
# ----------------------------------------------------------------------------
def abs_time_to_delta(times):
    """delta[:,0]=0, delta[:,t]=times[:,t]-times[:,t-1], clamped >= 0."""
    delta = jnp.concatenate(
        [jnp.zeros_like(times[:, :1]), times[:, 1:] - times[:, :-1]], axis=-1)
    return jnp.maximum(delta, 0.0)


@jax.jit
def rnn_exp_decay_forward(params, static, dp, cp, dp_times, cp_times):
    B, T = dp.shape
    Bp = ((B + 7) // 8) * 8                                  # sublane padding
    dp_dim = params["embed_dp"].shape[1]
    cp_dim = params["embed_cp"].shape[1]
    S = static.shape[1]
    offs = (0, dp_dim, 2 * dp_dim, 2 * dp_dim + cp_dim)      # hidden lane offs

    # Embedding lookups (padding_idx=0 rows are zero in the tables).
    emb_dp = params["embed_dp"][dp].astype(jnp.float32)      # [B, T, Hd]
    emb_cp = params["embed_cp"][cp].astype(jnp.float32)      # [B, T, Hc]

    # torch.round(x, decimals=3) equivalent + time deltas.
    dt_dp = abs_time_to_delta(jnp.round(dp_times * 1000.0) / 1000.0)
    dt_cp = abs_time_to_delta(jnp.round(cp_times * 1000.0) / 1000.0)

    def place(a, off):
        """[B, T, H] -> time-major, batch-padded, lane-placed [T, Bp, GW]."""
        a = jnp.swapaxes(a, 0, 1)
        return jnp.pad(a, ((0, 0), (0, Bp - B), (off, GW - off - a.shape[-1])))

    stream_cfg = [
        (emb_dp, dt_dp, params["gru_dp_fw"], False, offs[0]),
        (emb_dp, dt_dp, params["gru_dp_bw"], True,  offs[1]),
        (emb_cp, dt_cp, params["gru_cp_fw"], False, offs[2]),
        (emb_cp, dt_cp, params["gru_cp_bw"], True,  offs[3]),
    ]

    r_sec = jnp.zeros((T, Bp, GW), jnp.float32)
    z_sec = jnp.zeros((T, Bp, GW), jnp.float32)
    n_sec = jnp.zeros((T, Bp, GW), jnp.float32)
    dec_sec = jnp.zeros((T, Bp, GW), jnp.float32)
    for x, dt, prm, rev, off in stream_cfg:
        gr = x @ prm["w_ir"] + prm["b_r"]
        gz = x @ prm["w_iz"] + prm["b_z"]
        gn = x @ prm["w_in"] + prm["b_in"]
        dec = jnp.exp(-jnp.clip(prm["decays"], 0.0, 1000.0) * dt[..., None])
        if rev:  # backward direction: reverse time once here -> no per-step flip
            gr, gz, gn, dec = (jnp.flip(a, axis=1) for a in (gr, gz, gn, dec))
        r_sec = r_sec + place(gr, off)
        z_sec = z_sec + place(gz, off)
        n_sec = n_sec + place(gn, off)
        dec_sec = dec_sec + place(dec, off)

    gi_staged = jnp.concatenate([r_sec, z_sec, n_sec], axis=-1)  # [T,Bp,3*GW]

    # Static features + constant-1 bias lane for the folded head.
    sv = jnp.pad(static.astype(jnp.float32),
                 ((0, Bp - B), (STATIC_OFF, GW - STATIC_OFF - S)))
    sv = sv.at[:, BIAS_LANE].set(1.0)

    packed = params["packed"]
    out = pl.pallas_call(
        fused_rnn_exp_decay_kernel,
        out_shape=jax.ShapeDtypeStruct((Bp, GW), jnp.float32),
        in_specs=[VMEM_SPEC] * 6,
        out_specs=VMEM_SPEC,
    )(gi_staged, dec_sec, packed["w_h"], packed["b_h"], sv, packed["w_head"])

    # Dropout: eval-mode (identity).
    return out[:B, :1]


# ----------------------------------------------------------------------------
# Parameter construction (PyTorch layouts -> gate-separated + packed slabs)
# ----------------------------------------------------------------------------
def _uniform(key, shape, bound):
    return jax.random.uniform(key, shape, jnp.float32, minval=-bound, maxval=bound)


def _init_gru_torch(key, input_size, hidden_size):
    std = 1.0 / math.sqrt(hidden_size)
    k = jax.random.split(key, 5)
    return dict(
        w_ih=_uniform(k[0], (3 * hidden_size, input_size), std),   # rows: r,z,n
        w_hh=_uniform(k[1], (3 * hidden_size, hidden_size), std),
        b_ih=_uniform(k[2], (3 * hidden_size,), std),
        b_hh=_uniform(k[3], (3 * hidden_size,), std),
        decays=_uniform(k[4], (hidden_size,), std),
    )


def _prepare_gru(p):
    """torch GRUCell layout -> gate-separated, pre-transposed kernel params.
    r/z biases merged (b_ih+b_hh); n keeps b_in and b_hn separate because
    b_hn sits inside the r*(...) term."""
    H = p["decays"].shape[0]
    w_ih, w_hh, b_ih, b_hh = p["w_ih"], p["w_hh"], p["b_ih"], p["b_hh"]
    return dict(
        w_ir=w_ih[0:H].T, w_iz=w_ih[H:2 * H].T, w_in=w_ih[2 * H:3 * H].T,
        w_hr=w_hh[0:H].T, w_hz=w_hh[H:2 * H].T, w_hn=w_hh[2 * H:3 * H].T,
        b_r=(b_ih[0:H] + b_hh[0:H])[None, :],
        b_z=(b_ih[H:2 * H] + b_hh[H:2 * H])[None, :],
        b_in=b_ih[2 * H:3 * H][None, :],
        b_hn=b_hh[2 * H:3 * H][None, :],
        decays=p["decays"][None, :],
    )


def _pack_kernel_params(streams, head_raw, num_static):
    """Block-diagonal recurrent slab + folded head slab."""
    dims = [s["decays"].shape[-1] for s in streams]
    offs = [0]
    for d in dims[:-1]:
        offs.append(offs[-1] + d)
    assert sum(dims) <= STATIC_OFF
    assert STATIC_OFF + num_static < BIAS_LANE

    w_h = jnp.zeros((GW, 3 * GW), jnp.float32)
    b_h = jnp.zeros((1, 3 * GW), jnp.float32)
    for prm, off, H in zip(streams, offs, dims):
        for g, name in enumerate(("w_hr", "w_hz", "w_hn")):
            w_h = w_h.at[off:off + H, g * GW + off:g * GW + off + H].set(prm[name])
        b_h = b_h.at[0, 2 * GW + off:2 * GW + off + H].set(prm["b_hn"][0])

    dp_dim, cp_dim = dims[0], dims[2]
    wf = head_raw["fc_final_w"][0]          # [S+2]
    wdp = head_raw["fc_dp_w"][0]            # [2*dp_dim]
    wcp = head_raw["fc_cp_w"][0]            # [2*cp_dim]
    a_dp = wf[num_static]
    a_cp = wf[num_static + 1]
    v = jnp.zeros((GW,), jnp.float32)
    v = v.at[offs[0]:offs[0] + dp_dim].set(a_dp * wdp[:dp_dim])
    v = v.at[offs[1]:offs[1] + dp_dim].set(a_dp * wdp[dp_dim:])
    v = v.at[offs[2]:offs[2] + cp_dim].set(a_cp * wcp[:cp_dim])
    v = v.at[offs[3]:offs[3] + cp_dim].set(a_cp * wcp[cp_dim:])
    v = v.at[STATIC_OFF:STATIC_OFF + num_static].set(wf[:num_static])
    bias = (a_dp * head_raw["fc_dp_b"][0] + a_cp * head_raw["fc_cp_b"][0]
            + head_raw["fc_final_b"][0])
    v = v.at[BIAS_LANE].set(bias)
    w_head = jnp.zeros((GW, GW), jnp.float32).at[:, 0].set(v)
    return dict(w_h=w_h, b_h=b_h, w_head=w_head)


def init_params(key, num_static, num_dp_codes, num_cp_codes):
    dp_dim = int(num_dp_codes ** 0.25)
    cp_dim = int(num_cp_codes ** 0.25)
    ks = jax.random.split(key, 12)

    embed_dp = jax.random.normal(ks[0], (num_dp_codes, dp_dim), jnp.float32)
    embed_dp = embed_dp.at[0].set(0.0)                 # padding_idx=0
    embed_cp = jax.random.normal(ks[1], (num_cp_codes, cp_dim), jnp.float32)
    embed_cp = embed_cp.at[0].set(0.0)

    std_dp = 1.0 / math.sqrt(2 * dp_dim)
    std_cp = 1.0 / math.sqrt(2 * cp_dim)
    std_f = 1.0 / math.sqrt(num_static + 2)
    head_raw = dict(
        fc_dp_w=_uniform(ks[6], (1, 2 * dp_dim), std_dp),
        fc_dp_b=_uniform(ks[7], (1,), std_dp),
        fc_cp_w=_uniform(ks[8], (1, 2 * cp_dim), std_cp),
        fc_cp_b=_uniform(ks[9], (1,), std_cp),
        fc_final_w=_uniform(ks[10], (1, num_static + 2), std_f),
        fc_final_b=_uniform(ks[11], (1,), std_f),
    )

    gru_dp_fw = _prepare_gru(_init_gru_torch(ks[2], dp_dim, dp_dim))
    gru_dp_bw = _prepare_gru(_init_gru_torch(ks[3], dp_dim, dp_dim))
    gru_cp_fw = _prepare_gru(_init_gru_torch(ks[4], cp_dim, cp_dim))
    gru_cp_bw = _prepare_gru(_init_gru_torch(ks[5], cp_dim, cp_dim))

    return dict(
        embed_dp=embed_dp, embed_cp=embed_cp,
        gru_dp_fw=gru_dp_fw, gru_dp_bw=gru_dp_bw,
        gru_cp_fw=gru_cp_fw, gru_cp_bw=gru_cp_bw,
        head_raw=head_raw,
        packed=_pack_kernel_params([gru_dp_fw, gru_dp_bw, gru_cp_fw, gru_cp_bw],
                                   head_raw, num_static),
    )


# ----------------------------------------------------------------------------
# Pure-JAX reference (for in-script validation of the fused kernel)
# ----------------------------------------------------------------------------
def _reference_forward(params, static, dp, cp, dp_times, cp_times):
    def gru(x_bth, dt_bt, prm):
        B, T, _ = x_bth.shape
        H = prm["w_hr"].shape[0]
        decays = jnp.clip(prm["decays"], 0.0, 1000.0)
        h = jnp.zeros((B, H), jnp.float32)
        for t in range(T):
            x_t = x_bth[:, t, :]
            dt_t = dt_bt[:, t][:, None]
            h = h * jnp.exp(-decays * dt_t)
            r = jax.nn.sigmoid(x_t @ prm["w_ir"] + prm["b_r"] + h @ prm["w_hr"])
            z = jax.nn.sigmoid(x_t @ prm["w_iz"] + prm["b_z"] + h @ prm["w_hz"])
            n = jnp.tanh(x_t @ prm["w_in"] + prm["b_in"]
                         + r * (h @ prm["w_hn"] + prm["b_hn"]))
            h = (1.0 - z) * n + z * h
        return h

    emb_dp = params["embed_dp"][dp]
    emb_cp = params["embed_cp"][cp]
    dt_dp = abs_time_to_delta(jnp.round(dp_times * 1000.0) / 1000.0)
    dt_cp = abs_time_to_delta(jnp.round(cp_times * 1000.0) / 1000.0)

    h_dp_fw = gru(emb_dp, dt_dp, params["gru_dp_fw"])
    h_dp_bw = gru(jnp.flip(emb_dp, 1), jnp.flip(dt_dp, 1), params["gru_dp_bw"])
    h_cp_fw = gru(emb_cp, dt_cp, params["gru_cp_fw"])
    h_cp_bw = gru(jnp.flip(emb_cp, 1), jnp.flip(dt_cp, 1), params["gru_cp_bw"])

    hd = params["head_raw"]
    rnn_hn_dp = jnp.concatenate([h_dp_fw, h_dp_bw], axis=-1)
    rnn_hn_cp = jnp.concatenate([h_cp_fw, h_cp_bw], axis=-1)
    dp_value = rnn_hn_dp @ hd["fc_dp_w"].T + hd["fc_dp_b"]
    cp_value = rnn_hn_cp @ hd["fc_cp_w"].T + hd["fc_cp_b"]
    combined = jnp.concatenate([static, dp_value, cp_value], axis=-1)
    return combined @ hd["fc_final_w"].T + hd["fc_final_b"]


# ----------------------------------------------------------------------------
if __name__ == "__main__":
    num_static, num_dp_codes, num_cp_codes = 5, 300, 150
    B, T = 4, 8

    key = jax.random.PRNGKey(0)
    kp, kdp, kcp, kdt, kct, kst = jax.random.split(key, 6)

    params = init_params(kp, num_static, num_dp_codes, num_cp_codes)

    dp = jax.random.randint(kdp, (B, T), 0, num_dp_codes, dtype=jnp.int32)
    cp = jax.random.randint(kcp, (B, T), 0, num_cp_codes, dtype=jnp.int32)
    dp_times = jnp.sort(jax.random.uniform(kdt, (B, T), jnp.float32) * 10.0, axis=1)
    cp_times = jnp.sort(jax.random.uniform(kct, (B, T), jnp.float32) * 10.0, axis=1)
    static = jax.random.normal(kst, (B, num_static), jnp.float32)

    out = rnn_exp_decay_forward(params, static, dp, cp, dp_times, cp_times)
    out = jax.block_until_ready(out)
    assert out.shape == (B, 1)

    ref = _reference_forward(params, static, dp, cp, dp_times, cp_times)
    assert jnp.allclose(out, ref, atol=1e-2, rtol=1e-2), (out, ref)
    print("KERNEL_OK")
</pallas_src>

<mosaic_0001>
module attributes {stable_mosaic.version = 11 : i64} {
  func.func @fused_rnn_exp_decay_kernel(%arg0: memref<8x8x384xf32, #tpu.memory_space<vmem>>, %arg1: memref<8x8x128xf32, #tpu.memory_space<vmem>>, %arg2: memref<128x384xf32, #tpu.memory_space<vmem>>, %arg3: memref<1x384xf32, #tpu.memory_space<vmem>>, %arg4: memref<8x128xf32, #tpu.memory_space<vmem>>, %arg5: memref<128x128xf32, #tpu.memory_space<vmem>>, %arg6: memref<8x128xf32, #tpu.memory_space<vmem>>) attributes {dimension_semantics = [], scalar_prefetch = 0 : i64, scratch_operands = 0 : i64, tpu.core_type = #tpu.core_type<tc>} {
    %cst = arith.constant 0.000000e+00 : f32
    %0 = vector.broadcast %cst : f32 to vector<8x128xf32>
    %c0 = arith.constant 0 : index
    %c0_0 = arith.constant 0 : index
    %c0_1 = arith.constant 0 : index
    %1 = vector.load %arg0[%c0, %c0_0, %c0_1] : memref<8x8x384xf32, #tpu.memory_space<vmem>>, vector<1x8x384xf32>
    %2 = vector.shape_cast %1 : vector<1x8x384xf32> to vector<8x384xf32>
    %c0_2 = arith.constant 0 : index
    %c0_3 = arith.constant 0 : index
    %c0_4 = arith.constant 0 : index
    %3 = vector.load %arg1[%c0_2, %c0_3, %c0_4] : memref<8x8x128xf32, #tpu.memory_space<vmem>>, vector<1x8x128xf32>
    %4 = vector.shape_cast %3 : vector<1x8x128xf32> to vector<8x128xf32>
    %c0_5 = arith.constant 0 : index
    %c0_6 = arith.constant 0 : index
    %5 = vector.load %arg2[%c0_5, %c0_6] : memref<128x384xf32, #tpu.memory_space<vmem>>, vector<128x384xf32>
    %c0_7 = arith.constant 0 : index
    %c0_8 = arith.constant 0 : index
    %6 = vector.load %arg3[%c0_7, %c0_8] : memref<1x384xf32, #tpu.memory_space<vmem>>, vector<1x384xf32>
    %7 = arith.mulf %0, %4 : vector<8x128xf32>
    %cst_9 = arith.constant dense<0.000000e+00> : vector<8x384xf32>
    %8 = tpu.matmul %7, %5, %cst_9 {dimension_numbers = #tpu.dot_dimension_numbers<[1], [0], [0], [1], [0, 0, 1, 1], [], []>} : vector<8x128xf32>, vector<128x384xf32>, vector<8x384xf32> -> vector<8x384xf32>
    %9 = vector.broadcast %6 : vector<1x384xf32> to vector<8x384xf32>
    %10 = arith.addf %8, %9 : vector<8x384xf32>
    %11 = vector.extract_strided_slice %2 {offsets = [0, 0], sizes = [8, 256], strides = [1, 1]} : vector<8x384xf32> to vector<8x256xf32>
    %12 = vector.extract_strided_slice %10 {offsets = [0, 0], sizes = [8, 256], strides = [1, 1]} : vector<8x384xf32> to vector<8x256xf32>
    %13 = arith.addf %11, %12 : vector<8x256xf32>
    %14 = arith.negf %13 : vector<8x256xf32>
    %15 = math.exp %14 : vector<8x256xf32>
    %cst_10 = arith.constant 1.000000e+00 : f32
    %16 = vector.broadcast %cst_10 : f32 to vector<8x256xf32>
    %17 = arith.addf %16, %15 : vector<8x256xf32>
    %18 = arith.divf %16, %17 : vector<8x256xf32>
    %19 = vector.extract_strided_slice %18 {offsets = [0, 0], sizes = [8, 128], strides = [1, 1]} : vector<8x256xf32> to vector<8x128xf32>
    %20 = vector.extract_strided_slice %18 {offsets = [0, 128], sizes = [8, 128], strides = [1, 1]} : vector<8x256xf32> to vector<8x128xf32>
    %21 = vector.extract_strided_slice %2 {offsets = [0, 256], sizes = [8, 128], strides = [1, 1]} : vector<8x384xf32> to vector<8x128xf32>
    %22 = vector.extract_strided_slice %10 {offsets = [0, 256], sizes = [8, 128], strides = [1, 1]} : vector<8x384xf32> to vector<8x128xf32>
    %23 = arith.mulf %19, %22 : vector<8x128xf32>
    %24 = arith.addf %21, %23 : vector<8x128xf32>
    %25 = math.tanh %24 : vector<8x128xf32>
    %cst_11 = arith.constant 1.000000e+00 : f32
    %26 = vector.broadcast %cst_11 : f32 to vector<8x128xf32>
    %27 = arith.subf %26, %20 : vector<8x128xf32>
    %28 = arith.mulf %27, %25 : vector<8x128xf32>
    %29 = arith.mulf %20, %7 : vector<8x128xf32>
    %30 = arith.addf %28, %29 : vector<8x128xf32>
    %c1 = arith.constant 1 : index
    %c0_12 = arith.constant 0 : index
    %c0_13 = arith.constant 0 : index
    %31 = vector.load %arg0[%c1, %c0_12, %c0_13] : memref<8x8x384xf32, #tpu.memory_space<vmem>>, vector<1x8x384xf32>
    %32 = vector.shape_cast %31 : vector<1x8x384xf32> to vector<8x384xf32>
    %c1_14 = arith.constant 1 : index
    %c0_15 = arith.constant 0 : index
    %c0_16 = arith.constant 0 : index
    %33 = vector.load %arg1[%c1_14, %c0_15, %c0_16] : memref<8x8x128xf32, #tpu.memory_space<vmem>>, vector<1x8x128xf32>
    %34 = vector.shape_cast %33 : vector<1x8x128xf32> to vector<8x128xf32>
    %c0_17 = arith.constant 0 : index
    %c0_18 = arith.constant 0 : index
    %35 = vector.load %arg2[%c0_17, %c0_18] : memref<128x384xf32, #tpu.memory_space<vmem>>, vector<128x384xf32>
    %c0_19 = arith.constant 0 : index
    %c0_20 = arith.constant 0 : index
    %36 = vector.load %arg3[%c0_19, %c0_20] : memref<1x384xf32, #tpu.memory_space<vmem>>, vector<1x384xf32>
    %37 = arith.mulf %30, %34 : vector<8x128xf32>
    %cst_21 = arith.constant dense<0.000000e+00> : vector<8x384xf32>
    %38 = tpu.matmul %37, %35, %cst_21 {dimension_numbers = #tpu.dot_dimension_numbers<[1], [0], [0], [1], [0, 0, 1, 1], [], []>} : vector<8x128xf32>, vector<128x384xf32>, vector<8x384xf32> -> vector<8x384xf32>
    %39 = vector.broadcast %36 : vector<1x384xf32> to vector<8x384xf32>
    %40 = arith.addf %38, %39 : vector<8x384xf32>
    %41 = vector.extract_strided_slice %32 {offsets = [0, 0], sizes = [8, 256], strides = [1, 1]} : vector<8x384xf32> to vector<8x256xf32>
    %42 = vector.extract_strided_slice %40 {offsets = [0, 0], sizes = [8, 256], strides = [1, 1]} : vector<8x384xf32> to vector<8x256xf32>
    %43 = arith.addf %41, %42 : vector<8x256xf32>
    %44 = arith.negf %43 : vector<8x256xf32>
    %45 = math.exp %44 : vector<8x256xf32>
    %cst_22 = arith.constant 1.000000e+00 : f32
    %46 = vector.broadcast %cst_22 : f32 to vector<8x256xf32>
    %47 = arith.addf %46, %45 : vector<8x256xf32>
    %48 = arith.divf %46, %47 : vector<8x256xf32>
    %49 = vector.extract_strided_slice %48 {offsets = [0, 0], sizes = [8, 128], strides = [1, 1]} : vector<8x256xf32> to vector<8x128xf32>
    %50 = vector.extract_strided_slice %48 {offsets = [0, 128], sizes = [8, 128], strides = [1, 1]} : vector<8x256xf32> to vector<8x128xf32>
    %51 = vector.extract_strided_slice %32 {offsets = [0, 256], sizes = [8, 128], strides = [1, 1]} : vector<8x384xf32> to vector<8x128xf32>
    %52 = vector.extract_strided_slice %40 {offsets = [0, 256], sizes = [8, 128], strides = [1, 1]} : vector<8x384xf32> to vector<8x128xf32>
    %53 = arith.mulf %49, %52 : vector<8x128xf32>
    %54 = arith.addf %51, %53 : vector<8x128xf32>
    %55 = math.tanh %54 : vector<8x128xf32>
    %cst_23 = arith.constant 1.000000e+00 : f32
    %56 = vector.broadcast %cst_23 : f32 to vector<8x128xf32>
    %57 = arith.subf %56, %50 : vector<8x128xf32>
    %58 = arith.mulf %57, %55 : vector<8x128xf32>
    %59 = arith.mulf %50, %37 : vector<8x128xf32>
    %60 = arith.addf %58, %59 : vector<8x128xf32>
    %c2 = arith.constant 2 : index
    %c0_24 = arith.constant 0 : index
    %c0_25 = arith.constant 0 : index
    %61 = vector.load %arg0[%c2, %c0_24, %c0_25] : memref<8x8x384xf32, #tpu.memory_space<vmem>>, vector<1x8x384xf32>
    %62 = vector.shape_cast %61 : vector<1x8x384xf32> to vector<8x384xf32>
    %c2_26 = arith.constant 2 : index
    %c0_27 = arith.constant 0 : index
    %c0_28 = arith.constant 0 : index
    %63 = vector.load %arg1[%c2_26, %c0_27, %c0_28] : memref<8x8x128xf32, #tpu.memory_space<vmem>>, vector<1x8x128xf32>
    %64 = vector.shape_cast %63 : vector<1x8x128xf32> to vector<8x128xf32>
    %c0_29 = arith.constant 0 : index
    %c0_30 = arith.constant 0 : index
    %65 = vector.load %arg2[%c0_29, %c0_30] : memref<128x384xf32, #tpu.memory_space<vmem>>, vector<128x384xf32>
    %c0_31 = arith.constant 0 : index
    %c0_32 = arith.constant 0 : index
    %66 = vector.load %arg3[%c0_31, %c0_32] : memref<1x384xf32, #tpu.memory_space<vmem>>, vector<1x384xf32>
    %67 = arith.mulf %60, %64 : vector<8x128xf32>
    %cst_33 = arith.constant dense<0.000000e+00> : vector<8x384xf32>
    %68 = tpu.matmul %67, %65, %cst_33 {dimension_numbers = #tpu.dot_dimension_numbers<[1], [0], [0], [1], [0, 0, 1, 1], [], []>} : vector<8x128xf32>, vector<128x384xf32>, vector<8x384xf32> -> vector<8x384xf32>
    %69 = vector.broadcast %66 : vector<1x384xf32> to vector<8x384xf32>
    %70 = arith.addf %68, %69 : vector<8x384xf32>
    %71 = vector.extract_strided_slice %62 {offsets = [0, 0], sizes = [8, 256], strides = [1, 1]} : vector<8x384xf32> to vector<8x256xf32>
    %72 = vector.extract_strided_slice %70 {offsets = [0, 0], sizes = [8, 256], strides = [1, 1]} : vector<8x384xf32> to vector<8x256xf32>
    %73 = arith.addf %71, %72 : vector<8x256xf32>
    %74 = arith.negf %73 : vector<8x256xf32>
    %75 = math.exp %74 : vector<8x256xf32>
    %cst_34 = arith.constant 1.000000e+00 : f32
    %76 = vector.broadcast %cst_34 : f32 to vector<8x256xf32>
    %77 = arith.addf %76, %75 : vector<8x256xf32>
    %78 = arith.divf %76, %77 : vector<8x256xf32>
    %79 = vector.extract_strided_slice %78 {offsets = [0, 0], sizes = [8, 128], strides = [1, 1]} : vector<8x256xf32> to vector<8x128xf32>
    %80 = vector.extract_strided_slice %78 {offsets = [0, 128], sizes = [8, 128], strides = [1, 1]} : vector<8x256xf32> to vector<8x128xf32>
    %81 = vector.extract_strided_slice %62 {offsets = [0, 256], sizes = [8, 128], strides = [1, 1]} : vector<8x384xf32> to vector<8x128xf32>
    %82 = vector.extract_strided_slice %70 {offsets = [0, 256], sizes = [8, 128], strides = [1, 1]} : vector<8x384xf32> to vector<8x128xf32>
    %83 = arith.mulf %79, %82 : vector<8x128xf32>
    %84 = arith.addf %81, %83 : vector<8x128xf32>
    %85 = math.tanh %84 : vector<8x128xf32>
    %cst_35 = arith.constant 1.000000e+00 : f32
    %86 = vector.broadcast %cst_35 : f32 to vector<8x128xf32>
    %87 = arith.subf %86, %80 : vector<8x128xf32>
    %88 = arith.mulf %87, %85 : vector<8x128xf32>
    %89 = arith.mulf %80, %67 : vector<8x128xf32>
    %90 = arith.addf %88, %89 : vector<8x128xf32>
    %c3 = arith.constant 3 : index
    %c0_36 = arith.constant 0 : index
    %c0_37 = arith.constant 0 : index
    %91 = vector.load %arg0[%c3, %c0_36, %c0_37] : memref<8x8x384xf32, #tpu.memory_space<vmem>>, vector<1x8x384xf32>
    %92 = vector.shape_cast %91 : vector<1x8x384xf32> to vector<8x384xf32>
    %c3_38 = arith.constant 3 : index
    %c0_39 = arith.constant 0 : index
    %c0_40 = arith.constant 0 : index
    %93 = vector.load %arg1[%c3_38, %c0_39, %c0_40] : memref<8x8x128xf32, #tpu.memory_space<vmem>>, vector<1x8x128xf32>
    %94 = vector.shape_cast %93 : vector<1x8x128xf32> to vector<8x128xf32>
    %c0_41 = arith.constant 0 : index
    %c0_42 = arith.constant 0 : index
    %95 = vector.load %arg2[%c0_41, %c0_42] : memref<128x384xf32, #tpu.memory_space<vmem>>, vector<128x384xf32>
    %c0_43 = arith.constant 0 : index
    %c0_44 = arith.constant 0 : index
    %96 = vector.load %arg3[%c0_43, %c0_44] : memref<1x384xf32, #tpu.memory_space<vmem>>, vector<1x384xf32>
    %97 = arith.mulf %90, %94 : vector<8x128xf32>
    %cst_45 = arith.constant dense<0.000000e+00> : vector<8x384xf32>
    %98 = tpu.matmul %97, %95, %cst_45 {dimension_numbers = #tpu.dot_dimension_numbers<[1], [0], [0], [1], [0, 0, 1, 1], [], []>} : vector<8x128xf32>, vector<128x384xf32>, vector<8x384xf32> -> vector<8x384xf32>
    %99 = vector.broadcast %96 : vector<1x384xf32> to vector<8x384xf32>
    %100 = arith.addf %98, %99 : vector<8x384xf32>
    %101 = vector.extract_strided_slice %92 {offsets = [0, 0], sizes = [8, 256], strides = [1, 1]} : vector<8x384xf32> to vector<8x256xf32>
    %102 = vector.extract_strided_slice %100 {offsets = [0, 0], sizes = [8, 256], strides = [1, 1]} : vector<8x384xf32> to vector<8x256xf32>
    %103 = arith.addf %101, %102 : vector<8x256xf32>
    %104 = arith.negf %103 : vector<8x256xf32>
    %105 = math.exp %104 : vector<8x256xf32>
    %cst_46 = arith.constant 1.000000e+00 : f32
    %106 = vector.broadcast %cst_46 : f32 to vector<8x256xf32>
    %107 = arith.addf %106, %105 : vector<8x256xf32>
    %108 = arith.divf %106, %107 : vector<8x256xf32>
    %109 = vector.extract_strided_slice %108 {offsets = [0, 0], sizes = [8, 128], strides = [1, 1]} : vector<8x256xf32> to vector<8x128xf32>
    %110 = vector.extract_strided_slice %108 {offsets = [0, 128], sizes = [8, 128], strides = [1, 1]} : vector<8x256xf32> to vector<8x128xf32>
    %111 = vector.extract_strided_slice %92 {offsets = [0, 256], sizes = [8, 128], strides = [1, 1]} : vector<8x384xf32> to vector<8x128xf32>
    %112 = vector.extract_strided_slice %100 {offsets = [0, 256], sizes = [8, 128], strides = [1, 1]} : vector<8x384xf32> to vector<8x128xf32>
    %113 = arith.mulf %109, %112 : vector<8x128xf32>
    %114 = arith.addf %111, %113 : vector<8x128xf32>
    %115 = math.tanh %114 : vector<8x128xf32>
    %cst_47 = arith.constant 1.000000e+00 : f32
    %116 = vector.broadcast %cst_47 : f32 to vector<8x128xf32>
    %117 = arith.subf %116, %110 : vector<8x128xf32>
    %118 = arith.mulf %117, %115 : vector<8x128xf32>
    %119 = arith.mulf %110, %97 : vector<8x128xf32>
    %120 = arith.addf %118, %119 : vector<8x128xf32>
    %c4 = arith.constant 4 : index
    %c0_48 = arith.constant 0 : index
    %c0_49 = arith.constant 0 : index
    %121 = vector.load %arg0[%c4, %c0_48, %c0_49] : memref<8x8x384xf32, #tpu.memory_space<vmem>>, vector<1x8x384xf32>
    %122 = vector.shape_cast %121 : vector<1x8x384xf32> to vector<8x384xf32>
    %c4_50 = arith.constant 4 : index
    %c0_51 = arith.constant 0 : index
    %c0_52 = arith.constant 0 : index
    %123 = vector.load %arg1[%c4_50, %c0_51, %c0_52] : memref<8x8x128xf32, #tpu.memory_space<vmem>>, vector<1x8x128xf32>
    %124 = vector.shape_cast %123 : vector<1x8x128xf32> to vector<8x128xf32>
    %c0_53 = arith.constant 0 : index
    %c0_54 = arith.constant 0 : index
    %125 = vector.load %arg2[%c0_53, %c0_54] : memref<128x384xf32, #tpu.memory_space<vmem>>, vector<128x384xf32>
    %c0_55 = arith.constant 0 : index
    %c0_56 = arith.constant 0 : index
    %126 = vector.load %arg3[%c0_55, %c0_56] : memref<1x384xf32, #tpu.memory_space<vmem>>, vector<1x384xf32>
    %127 = arith.mulf %120, %124 : vector<8x128xf32>
    %cst_57 = arith.constant dense<0.000000e+00> : vector<8x384xf32>
    %128 = tpu.matmul %127, %125, %cst_57 {dimension_numbers = #tpu.dot_dimension_numbers<[1], [0], [0], [1], [0, 0, 1, 1], [], []>} : vector<8x128xf32>, vector<128x384xf32>, vector<8x384xf32> -> vector<8x384xf32>
    %129 = vector.broadcast %126 : vector<1x384xf32> to vector<8x384xf32>
    %130 = arith.addf %128, %129 : vector<8x384xf32>
    %131 = vector.extract_strided_slice %122 {offsets = [0, 0], sizes = [8, 256], strides = [1, 1]} : vector<8x384xf32> to vector<8x256xf32>
    %132 = vector.extract_strided_slice %130 {offsets = [0, 0], sizes = [8, 256], strides = [1, 1]} : vector<8x384xf32> to vector<8x256xf32>
    %133 = arith.addf %131, %132 : vector<8x256xf32>
    %134 = arith.negf %133 : vector<8x256xf32>
    %135 = math.exp %134 : vector<8x256xf32>
    %cst_58 = arith.constant 1.000000e+00 : f32
    %136 = vector.broadcast %cst_58 : f32 to vector<8x256xf32>
    %137 = arith.addf %136, %135 : vector<8x256xf32>
    %138 = arith.divf %136, %137 : vector<8x256xf32>
    %139 = vector.extract_strided_slice %138 {offsets = [0, 0], sizes = [8, 128], strides = [1, 1]} : vector<8x256xf32> to vector<8x128xf32>
    %140 = vector.extract_strided_slice %138 {offsets = [0, 128], sizes = [8, 128], strides = [1, 1]} : vector<8x256xf32> to vector<8x128xf32>
    %141 = vector.extract_strided_slice %122 {offsets = [0, 256], sizes = [8, 128], strides = [1, 1]} : vector<8x384xf32> to vector<8x128xf32>
    %142 = vector.extract_strided_slice %130 {offsets = [0, 256], sizes = [8, 128], strides = [1, 1]} : vector<8x384xf32> to vector<8x128xf32>
    %143 = arith.mulf %139, %142 : vector<8x128xf32>
    %144 = arith.addf %141, %143 : vector<8x128xf32>
    %145 = math.tanh %144 : vector<8x128xf32>
    %cst_59 = arith.constant 1.000000e+00 : f32
    %146 = vector.broadcast %cst_59 : f32 to vector<8x128xf32>
    %147 = arith.subf %146, %140 : vector<8x128xf32>
    %148 = arith.mulf %147, %145 : vector<8x128xf32>
    %149 = arith.mulf %140, %127 : vector<8x128xf32>
    %150 = arith.addf %148, %149 : vector<8x128xf32>
    %c5 = arith.constant 5 : index
    %c0_60 = arith.constant 0 : index
    %c0_61 = arith.constant 0 : index
    %151 = vector.load %arg0[%c5, %c0_60, %c0_61] : memref<8x8x384xf32, #tpu.memory_space<vmem>>, vector<1x8x384xf32>
    %152 = vector.shape_cast %151 : vector<1x8x384xf32> to vector<8x384xf32>
    %c5_62 = arith.constant 5 : index
    %c0_63 = arith.constant 0 : index
    %c0_64 = arith.constant 0 : index
    %153 = vector.load %arg1[%c5_62, %c0_63, %c0_64] : memref<8x8x128xf32, #tpu.memory_space<vmem>>, vector<1x8x128xf32>
    %154 = vector.shape_cast %153 : vector<1x8x128xf32> to vector<8x128xf32>
    %c0_65 = arith.constant 0 : index
    %c0_66 = arith.constant 0 : index
    %155 = vector.load %arg2[%c0_65, %c0_66] : memref<128x384xf32, #tpu.memory_space<vmem>>, vector<128x384xf32>
    %c0_67 = arith.constant 0 : index
    %c0_68 = arith.constant 0 : index
    %156 = vector.load %arg3[%c0_67, %c0_68] : memref<1x384xf32, #tpu.memory_space<vmem>>, vector<1x384xf32>
    %157 = arith.mulf %150, %154 : vector<8x128xf32>
    %cst_69 = arith.constant dense<0.000000e+00> : vector<8x384xf32>
    %158 = tpu.matmul %157, %155, %cst_69 {dimension_numbers = #tpu.dot_dimension_numbers<[1], [0], [0], [1], [0, 0, 1, 1], [], []>} : vector<8x128xf32>, vector<128x384xf32>, vector<8x384xf32> -> vector<8x384xf32>
    %159 = vector.broadcast %156 : vector<1x384xf32> to vector<8x384xf32>
    %160 = arith.addf %158, %159 : vector<8x384xf32>
    %161 = vector.extract_strided_slice %152 {offsets = [0, 0], sizes = [8, 256], strides = [1, 1]} : vector<8x384xf32> to vector<8x256xf32>
    %162 = vector.extract_strided_slice %160 {offsets = [0, 0], sizes = [8, 256], strides = [1, 1]} : vector<8x384xf32> to vector<8x256xf32>
    %163 = arith.addf %161, %162 : vector<8x256xf32>
    %164 = arith.negf %163 : vector<8x256xf32>
    %165 = math.exp %164 : vector<8x256xf32>
    %cst_70 = arith.constant 1.000000e+00 : f32
    %166 = vector.broadcast %cst_70 : f32 to vector<8x256xf32>
    %167 = arith.addf %166, %165 : vector<8x256xf32>
    %168 = arith.divf %166, %167 : vector<8x256xf32>
    %169 = vector.extract_strided_slice %168 {offsets = [0, 0], sizes = [8, 128], strides = [1, 1]} : vector<8x256xf32> to vector<8x128xf32>
    %170 = vector.extract_strided_slice %168 {offsets = [0, 128], sizes = [8, 128], strides = [1, 1]} : vector<8x256xf32> to vector<8x128xf32>
    %171 = vector.extract_strided_slice %152 {offsets = [0, 256], sizes = [8, 128], strides = [1, 1]} : vector<8x384xf32> to vector<8x128xf32>
    %172 = vector.extract_strided_slice %160 {offsets = [0, 256], sizes = [8, 128], strides = [1, 1]} : vector<8x384xf32> to vector<8x128xf32>
    %173 = arith.mulf %169, %172 : vector<8x128xf32>
    %174 = arith.addf %171, %173 : vector<8x128xf32>
    %175 = math.tanh %174 : vector<8x128xf32>
    %cst_71 = arith.constant 1.000000e+00 : f32
    %176 = vector.broadcast %cst_71 : f32 to vector<8x128xf32>
    %177 = arith.subf %176, %170 : vector<8x128xf32>
    %178 = arith.mulf %177, %175 : vector<8x128xf32>
    %179 = arith.mulf %170, %157 : vector<8x128xf32>
    %180 = arith.addf %178, %179 : vector<8x128xf32>
    %c6 = arith.constant 6 : index
    %c0_72 = arith.constant 0 : index
    %c0_73 = arith.constant 0 : index
    %181 = vector.load %arg0[%c6, %c0_72, %c0_73] : memref<8x8x384xf32, #tpu.memory_space<vmem>>, vector<1x8x384xf32>
    %182 = vector.shape_cast %181 : vector<1x8x384xf32> to vector<8x384xf32>
    %c6_74 = arith.constant 6 : index
    %c0_75 = arith.constant 0 : index
    %c0_76 = arith.constant 0 : index
    %183 = vector.load %arg1[%c6_74, %c0_75, %c0_76] : memref<8x8x128xf32, #tpu.memory_space<vmem>>, vector<1x8x128xf32>
    %184 = vector.shape_cast %183 : vector<1x8x128xf32> to vector<8x128xf32>
    %c0_77 = arith.constant 0 : index
    %c0_78 = arith.constant 0 : index
    %185 = vector.load %arg2[%c0_77, %c0_78] : memref<128x384xf32, #tpu.memory_space<vmem>>, vector<128x384xf32>
    %c0_79 = arith.constant 0 : index
    %c0_80 = arith.constant 0 : index
    %186 = vector.load %arg3[%c0_79, %c0_80] : memref<1x384xf32, #tpu.memory_space<vmem>>, vector<1x384xf32>
    %187 = arith.mulf %180, %184 : vector<8x128xf32>
    %cst_81 = arith.constant dense<0.000000e+00> : vector<8x384xf32>
    %188 = tpu.matmul %187, %185, %cst_81 {dimension_numbers = #tpu.dot_dimension_numbers<[1], [0], [0], [1], [0, 0, 1, 1], [], []>} : vector<8x128xf32>, vector<128x384xf32>, vector<8x384xf32> -> vector<8x384xf32>
    %189 = vector.broadcast %186 : vector<1x384xf32> to vector<8x384xf32>
    %190 = arith.addf %188, %189 : vector<8x384xf32>
    %191 = vector.extract_strided_slice %182 {offsets = [0, 0], sizes = [8, 256], strides = [1, 1]} : vector<8x384xf32> to vector<8x256xf32>
    %192 = vector.extract_strided_slice %190 {offsets = [0, 0], sizes = [8, 256], strides = [1, 1]} : vector<8x384xf32> to vector<8x256xf32>
    %193 = arith.addf %191, %192 : vector<8x256xf32>
    %194 = arith.negf %193 : vector<8x256xf32>
    %195 = math.exp %194 : vector<8x256xf32>
    %cst_82 = arith.constant 1.000000e+00 : f32
    %196 = vector.broadcast %cst_82 : f32 to vector<8x256xf32>
    %197 = arith.addf %196, %195 : vector<8x256xf32>
    %198 = arith.divf %196, %197 : vector<8x256xf32>
    %199 = vector.extract_strided_slice %198 {offsets = [0, 0], sizes = [8, 128], strides = [1, 1]} : vector<8x256xf32> to vector<8x128xf32>
    %200 = vector.extract_strided_slice %198 {offsets = [0, 128], sizes = [8, 128], strides = [1, 1]} : vector<8x256xf32> to vector<8x128xf32>
    %201 = vector.extract_strided_slice %182 {offsets = [0, 256], sizes = [8, 128], strides = [1, 1]} : vector<8x384xf32> to vector<8x128xf32>
    %202 = vector.extract_strided_slice %190 {offsets = [0, 256], sizes = [8, 128], strides = [1, 1]} : vector<8x384xf32> to vector<8x128xf32>
    %203 = arith.mulf %199, %202 : vector<8x128xf32>
    %204 = arith.addf %201, %203 : vector<8x128xf32>
    %205 = math.tanh %204 : vector<8x128xf32>
    %cst_83 = arith.constant 1.000000e+00 : f32
    %206 = vector.broadcast %cst_83 : f32 to vector<8x128xf32>
    %207 = arith.subf %206, %200 : vector<8x128xf32>
    %208 = arith.mulf %207, %205 : vector<8x128xf32>
    %209 = arith.mulf %200, %187 : vector<8x128xf32>
    %210 = arith.addf %208, %209 : vector<8x128xf32>
    %c7 = arith.constant 7 : index
    %c0_84 = arith.constant 0 : index
    %c0_85 = arith.constant 0 : index
    %211 = vector.load %arg0[%c7, %c0_84, %c0_85] : memref<8x8x384xf32, #tpu.memory_space<vmem>>, vector<1x8x384xf32>
    %212 = vector.shape_cast %211 : vector<1x8x384xf32> to vector<8x384xf32>
    %c7_86 = arith.constant 7 : index
    %c0_87 = arith.constant 0 : index
    %c0_88 = arith.constant 0 : index
    %213 = vector.load %arg1[%c7_86, %c0_87, %c0_88] : memref<8x8x128xf32, #tpu.memory_space<vmem>>, vector<1x8x128xf32>
    %214 = vector.shape_cast %213 : vector<1x8x128xf32> to vector<8x128xf32>
    %c0_89 = arith.constant 0 : index
    %c0_90 = arith.constant 0 : index
    %215 = vector.load %arg2[%c0_89, %c0_90] : memref<128x384xf32, #tpu.memory_space<vmem>>, vector<128x384xf32>
    %c0_91 = arith.constant 0 : index
    %c0_92 = arith.constant 0 : index
    %216 = vector.load %arg3[%c0_91, %c0_92] : memref<1x384xf32, #tpu.memory_space<vmem>>, vector<1x384xf32>
    %217 = arith.mulf %210, %214 : vector<8x128xf32>
    %cst_93 = arith.constant dense<0.000000e+00> : vector<8x384xf32>
    %218 = tpu.matmul %217, %215, %cst_93 {dimension_numbers = #tpu.dot_dimension_numbers<[1], [0], [0], [1], [0, 0, 1, 1], [], []>} : vector<8x128xf32>, vector<128x384xf32>, vector<8x384xf32> -> vector<8x384xf32>
    %219 = vector.broadcast %216 : vector<1x384xf32> to vector<8x384xf32>
    %220 = arith.addf %218, %219 : vector<8x384xf32>
    %221 = vector.extract_strided_slice %212 {offsets = [0, 0], sizes = [8, 256], strides = [1, 1]} : vector<8x384xf32> to vector<8x256xf32>
    %222 = vector.extract_strided_slice %220 {offsets = [0, 0], sizes = [8, 256], strides = [1, 1]} : vector<8x384xf32> to vector<8x256xf32>
    %223 = arith.addf %221, %222 : vector<8x256xf32>
    %224 = arith.negf %223 : vector<8x256xf32>
    %225 = math.exp %224 : vector<8x256xf32>
    %cst_94 = arith.constant 1.000000e+00 : f32
    %226 = vector.broadcast %cst_94 : f32 to vector<8x256xf32>
    %227 = arith.addf %226, %225 : vector<8x256xf32>
    %228 = arith.divf %226, %227 : vector<8x256xf32>
    %229 = vector.extract_strided_slice %228 {offsets = [0, 0], sizes = [8, 128], strides = [1, 1]} : vector<8x256xf32> to vector<8x128xf32>
    %230 = vector.extract_strided_slice %228 {offsets = [0, 128], sizes = [8, 128], strides = [1, 1]} : vector<8x256xf32> to vector<8x128xf32>
    %231 = vector.extract_strided_slice %212 {offsets = [0, 256], sizes = [8, 128], strides = [1, 1]} : vector<8x384xf32> to vector<8x128xf32>
    %232 = vector.extract_strided_slice %220 {offsets = [0, 256], sizes = [8, 128], strides = [1, 1]} : vector<8x384xf32> to vector<8x128xf32>
    %233 = arith.mulf %229, %232 : vector<8x128xf32>
    %234 = arith.addf %231, %233 : vector<8x128xf32>
    %235 = math.tanh %234 : vector<8x128xf32>
    %cst_95 = arith.constant 1.000000e+00 : f32
    %236 = vector.broadcast %cst_95 : f32 to vector<8x128xf32>
    %237 = arith.subf %236, %230 : vector<8x128xf32>
    %238 = arith.mulf %237, %235 : vector<8x128xf32>
    %239 = arith.mulf %230, %217 : vector<8x128xf32>
    %240 = arith.addf %238, %239 : vector<8x128xf32>
    %c0_96 = arith.constant 0 : index
    %c0_97 = arith.constant 0 : index
    %241 = vector.load %arg4[%c0_96, %c0_97] : memref<8x128xf32, #tpu.memory_space<vmem>>, vector<8x128xf32>
    %242 = arith.addf %240, %241 : vector<8x128xf32>
    %c0_98 = arith.constant 0 : index
    %c0_99 = arith.constant 0 : index
    %243 = vector.load %arg5[%c0_98, %c0_99] : memref<128x128xf32, #tpu.memory_space<vmem>>, vector<128x128xf32>
    %cst_100 = arith.constant dense<0.000000e+00> : vector<8x128xf32>
    %244 = tpu.matmul %242, %243, %cst_100 {dimension_numbers = #tpu.dot_dimension_numbers<[1], [0], [0], [1], [0, 0, 1, 1], [], []>} : vector<8x128xf32>, vector<128x128xf32>, vector<8x128xf32> -> vector<8x128xf32>
    %c0_101 = arith.constant 0 : index
    %c0_102 = arith.constant 0 : index
    %245 = vector.load %arg6[%c0_101, %c0_102] : memref<8x128xf32, #tpu.memory_space<vmem>>, vector<8x128xf32>
    tpu.vector_store %arg6[%c0_101, %c0_102], %244 {strides = array<i32>} : memref<8x128xf32, #tpu.memory_space<vmem>>, vector<8x128xf32>,
    return
  }
}

</mosaic_0001>

<llo_original>
// kernel: rnn_exp_decay_forward.1
$region0: #{rnn_exp_decay_forward.1}
  #allocation0 [shape = 'u32[]', space=smem, size = 0x4, offset = 0x4, fixed_abs, tag = 'smem constant byte address 0x4 - core index']
  #allocation1 [shape = 'u32[144,128]{1,0:T(1,128)}', space=vmem, size = 0x12000, scoped, tag = 'internal scratch']
  %s0 = inlined_call_operand.vmem [shape: f32[8,8,384], index: 0, kind: input, shape index: {}]
  %s1 = inlined_call_operand.vmem [shape: f32[8,8,128], index: 1, kind: input, shape index: {}]
  %s2 = inlined_call_operand.vmem [shape: f32[128,384], index: 2, kind: input, shape index: {}]
  %s3 = inlined_call_operand.vmem [shape: f32[1,384], index: 3, kind: input, shape index: {}]
  %s4 = inlined_call_operand.vmem [shape: f32[8,128], index: 4, kind: input, shape index: {}]
  %s5 = inlined_call_operand.vmem [shape: f32[128,128], index: 5, kind: input, shape index: {}]
  %s6 = inlined_call_operand.vmem [shape: f32[8,128], index: 6, kind: output, shape index: {}]
  %s7 = sld [smem:[#allocation0]]
  $region34: #{rnn_exp_decay_forward.1} parent=0
    _
  %s9 = ssub.s32 1, %s7
  %s10 = scalar_select 0, %s9, %s7
  // Predicated region
  $region2: #{rnn_exp_decay_forward.1} parent=0 // pred_check
    _
  $region3: #{rnn_exp_decay_forward.1} parent=0 // pred_check_branch
    %12 = sbr.rel (0) target = $region5
  $region4: #{rnn_exp_decay_forward.1} parent=0 // pred_region
    _
  $region5: #{rnn_exp_decay_forward.1} parent=0 // pred_fallthru
    _
  // Predicated region
  $region6: #{rnn_exp_decay_forward.1} parent=0 // pred_check
    _
  $region7: #{rnn_exp_decay_forward.1} parent=0 // pred_check_branch
    %14 = sbr.rel (0) target = $region9
  $region8: #{rnn_exp_decay_forward.1} parent=0 // pred_region
    _
  $region9: #{rnn_exp_decay_forward.1} parent=0 // pred_fallthru
    _
  // Predicated region
  $region10: #{rnn_exp_decay_forward.1} parent=0 // pred_check
    _
  $region11: #{rnn_exp_decay_forward.1} parent=0 // pred_check_branch
    %16 = sbr.rel (0) target = $region13
  $region12: #{rnn_exp_decay_forward.1} parent=0 // pred_region
    _
  $region13: #{rnn_exp_decay_forward.1} parent=0 // pred_fallthru
    _
  // Predicated region
  $region14: #{rnn_exp_decay_forward.1} parent=0 // pred_check
    _
  $region15: #{rnn_exp_decay_forward.1} parent=0 // pred_check_branch
    %18 = sbr.rel (0) target = $region17
  $region16: #{rnn_exp_decay_forward.1} parent=0 // pred_region
    _
  $region17: #{rnn_exp_decay_forward.1} parent=0 // pred_fallthru
    _
  // Predicated region
  $region18: #{rnn_exp_decay_forward.1} parent=0 // pred_check
    _
  $region19: #{rnn_exp_decay_forward.1} parent=0 // pred_check_branch
    %20 = sbr.rel (0) target = $region21
  $region20: #{rnn_exp_decay_forward.1} parent=0 // pred_region
    _
  $region21: #{rnn_exp_decay_forward.1} parent=0 // pred_fallthru
    _
  // Predicated region
  $region22: #{rnn_exp_decay_forward.1} parent=0 // pred_check
    _
  $region23: #{rnn_exp_decay_forward.1} parent=0 // pred_check_branch
    %22 = sbr.rel (0) target = $region25
  $region24: #{rnn_exp_decay_forward.1} parent=0 // pred_region
    _
  $region25: #{rnn_exp_decay_forward.1} parent=0 // pred_fallthru
    _
  %v23 = vld [vmem:[%s0] sm:$0xff]
  %v24 = vld [vmem:[%s0 + $0x8] sm:$0xff]
  %v25 = vld [vmem:[%s0 + $0x10] sm:$0xff]
  %v26 = vld [vmem:[%s1] sm:$0xff]
  %v27 = vld [vmem:[%s2] sm:$0xff]
  %v28 = vld [vmem:[%s2 + $0x8] sm:$0xff]
  %v29 = vld [vmem:[%s2 + $0x10] sm:$0xff]
  %v30 = vld [vmem:[%s2 + $0x18] sm:$0xff]
  %v31 = vld [vmem:[%s2 + $0x20] sm:$0xff]
  %v32 = vld [vmem:[%s2 + $0x28] sm:$0xff]
  %v33 = vld [vmem:[%s2 + $0x30] sm:$0xff]
  %v34 = vld [vmem:[%s2 + $0x38] sm:$0xff]
  %v35 = vld [vmem:[%s2 + $0x40] sm:$0xff]
  %v36 = vld [vmem:[%s2 + $0x48] sm:$0xff]
  %v37 = vld [vmem:[%s2 + $0x50] sm:$0xff]
  %v38 = vld [vmem:[%s2 + $0x58] sm:$0xff]
  %v39 = vld [vmem:[%s2 + $0x60] sm:$0xff]
  %v40 = vld [vmem:[%s2 + $0x68] sm:$0xff]
  %v41 = vld [vmem:[%s2 + $0x70] sm:$0xff]
  %v42 = vld [vmem:[%s2 + $0x78] sm:$0xff]
  %v43 = vld [vmem:[%s2 + $0x80] sm:$0xff]
  %v44 = vld [vmem:[%s2 + $0x88] sm:$0xff]
  %v45 = vld [vmem:[%s2 + $0x90] sm:$0xff]
  %v46 = vld [vmem:[%s2 + $0x98] sm:$0xff]
  %v47 = vld [vmem:[%s2 + $0xa0] sm:$0xff]
  %v48 = vld [vmem:[%s2 + $0xa8] sm:$0xff]
  %v49 = vld [vmem:[%s2 + $0xb0] sm:$0xff]
  %v50 = vld [vmem:[%s2 + $0xb8] sm:$0xff]
  %v51 = vld [vmem:[%s2 + $0xc0] sm:$0xff]
  %v52 = vld [vmem:[%s2 + $0xc8] sm:$0xff]
  %v53 = vld [vmem:[%s2 + $0xd0] sm:$0xff]
  %v54 = vld [vmem:[%s2 + $0xd8] sm:$0xff]
  %v55 = vld [vmem:[%s2 + $0xe0] sm:$0xff]
  %v56 = vld [vmem:[%s2 + $0xe8] sm:$0xff]
  %v57 = vld [vmem:[%s2 + $0xf0] sm:$0xff]
  %v58 = vld [vmem:[%s2 + $0xf8] sm:$0xff]
  %v59 = vld [vmem:[%s2 + $0x100] sm:$0xff]
  %v60 = vld [vmem:[%s2 + $0x108] sm:$0xff]
  %v61 = vld [vmem:[%s2 + $0x110] sm:$0xff]
  %v62 = vld [vmem:[%s2 + $0x118] sm:$0xff]
  %v63 = vld [vmem:[%s2 + $0x120] sm:$0xff]
  %v64 = vld [vmem:[%s2 + $0x128] sm:$0xff]
  %v65 = vld [vmem:[%s2 + $0x130] sm:$0xff]
  %v66 = vld [vmem:[%s2 + $0x138] sm:$0xff]
  %v67 = vld [vmem:[%s2 + $0x140] sm:$0xff]
  %v68 = vld [vmem:[%s2 + $0x148] sm:$0xff]
  %v69 = vld [vmem:[%s2 + $0x150] sm:$0xff]
  %v70 = vld [vmem:[%s2 + $0x158] sm:$0xff]
  %v71 = vld [vmem:[%s2 + $0x160] sm:$0xff]
  %v72 = vld [vmem:[%s2 + $0x168] sm:$0xff]
  %v73 = vld [vmem:[%s2 + $0x170] sm:$0xff]
  %v74 = vld [vmem:[%s2 + $0x178] sm:$0xff]
  %v75 = vld [vmem:[%s3] sm:$0x7]
  %v76 = vmul.f32 %v26, 0.0
  %v78 = vlaneseq
  %v79 = vshrl.u32 %v78, 7
  %v80 = vsub.s32 0, %v79
  %v81 = vrot.slane %v75, %v80
  %v82 = vlaneseq
  %v83 = vshrl.u32 %v82, 7
  %v84 = vsub.s32 1, %v83
  %v85 = vrot.slane %v75, %v84
  %v86 = vlaneseq
  %v87 = vshrl.u32 %v86, 7
  %v88 = vsub.s32 2, %v87
  %v89 = vrot.slane %v75, %v88
  %93 = vmatprep.subr.mxu0 %v73
  %94 = vmatpush1.msra.mxu0 %v72
  %95 = vmatprep.subr.mxu0 %v70
  %96 = vmatpush1.msra.mxu0 %v69
  %97 = vmatprep.subr.mxu0 %v67
  %98 = vmatpush1.msra.mxu0 %v66
  %99 = vmatprep.subr.mxu0 %v64
  %100 = vmatpush1.msra.mxu0 %v63
  %101 = vmatprep.subr.mxu0 %v61
  %102 = vmatpush1.msra.mxu0 %v60
  %103 = vmatprep.subr.mxu0 %v58
  %104 = vmatpush1.msra.mxu0 %v57
  %105 = vmatprep.subr.mxu0 %v55
  %106 = vmatpush1.msra.mxu0 %v54
  %107 = vmatprep.subr.mxu0 %v52
  %108 = vmatpush1.msra.mxu0 %v51
  %109 = vmatprep.subr.mxu0 %v49
  %110 = vmatpush1.msra.mxu0 %v48
  %111 = vmatprep.subr.mxu0 %v46
  %112 = vmatpush1.msra.mxu0 %v45
  %113 = vmatprep.subr.mxu0 %v43
  %114 = vmatpush1.msra.mxu0 %v42
  %115 = vmatprep.subr.mxu0 %v40
  %116 = vmatpush1.msra.mxu0 %v39
  %117 = vmatprep.subr.mxu0 %v37
  %118 = vmatpush1.msra.mxu0 %v36
  %119 = vmatprep.subr.mxu0 %v34
  %120 = vmatpush1.msra.mxu0 %v33
  %121 = vmatprep.subr.mxu0 %v31
  %122 = vmatpush1.msra.mxu0 %v30
  %123 = vmatprep.subr.mxu0 %v28
  %124 = vmatpush1.msra.mxu0 %v27
  %125 = vmatprep.subr.mxu0 0.0
  %126 = vmatpush2.msra.mxu0 0.0
  %127 = vmatprep.subr.mxu0 0.0
  %128 = vmatpush2.msra.mxu0 0.0
  %129 = vmatprep.subr.mxu0 0.0
  %130 = vmatpush2.msra.mxu0 0.0
  %131 = vmatprep.subr.mxu0 0.0
  %132 = vmatpush2.msra.mxu0 0.0
  %133 = vmatprep.subr.mxu0 0.0
  %134 = vmatpush2.msra.mxu0 0.0
  %135 = vmatprep.subr.mxu0 0.0
  %136 = vmatpush2.msra.mxu0 0.0
  %137 = vmatprep.subr.mxu0 0.0
  %138 = vmatpush2.msra.mxu0 0.0
  %139 = vmatprep.subr.mxu0 0.0
  %140 = vmatpush2.msra.mxu0 0.0
  %141 = vmatprep.subr.mxu0 0.0
  %142 = vmatpush2.msra.mxu0 0.0
  %143 = vmatprep.subr.mxu0 0.0
  %144 = vmatpush2.msra.mxu0 0.0
  %145 = vmatprep.subr.mxu0 0.0
  %146 = vmatpush2.msra.mxu0 0.0
  %147 = vmatprep.subr.mxu0 0.0
  %148 = vmatpush2.msra.mxu0 0.0
  %149 = vmatprep.subr.mxu0 0.0
  %150 = vmatpush2.msra.mxu0 0.0
  %151 = vmatprep.subr.mxu0 0.0
  %152 = vmatpush2.msra.mxu0 0.0
  %153 = vmatprep.subr.mxu0 0.0
  %154 = vmatpush2.msra.mxu0 0.0
  %155 = vmatprep.subr.mxu0 0.0
  %156 = vmatpush2.msra.mxu0 0.0
  %157 = vmatprep.mubr.f32.mxu0 0.0
  %158 = vmatmul.mubr.f32.gmra.mxu0 %v76
  %v159 = vpop.f32.mrf.mxu0
  %v160 = vadd.f32 %v81, %v159
  %v161 = vpop.f32.mrf.mxu0
  %v162 = vadd.f32 %v85, %v161
  %163 = vdwg.mxu0
  %164 = vmatprep.subr.mxu0 0.0
  %165 = vmatpush1.msra.mxu0 %v74
  %166 = vmatprep.subr.mxu0 0.0
  %167 = vmatpush1.msra.mxu0 %v71
  %168 = vmatprep.subr.mxu0 0.0
  %169 = vmatpush1.msra.mxu0 %v68
  %170 = vmatprep.subr.mxu0 0.0
  %171 = vmatpush1.msra.mxu0 %v65
  %172 = vmatprep.subr.mxu0 0.0
  %173 = vmatpush1.msra.mxu0 %v62
  %174 = vmatprep.subr.mxu0 0.0
  %175 = vmatpush1.msra.mxu0 %v59
  %176 = vmatprep.subr.mxu0 0.0
  %177 = vmatpush1.msra.mxu0 %v56
  %178 = vmatprep.subr.mxu0 0.0
  %179 = vmatpush1.msra.mxu0 %v53
  %180 = vmatprep.subr.mxu0 0.0
  %181 = vmatpush1.msra.mxu0 %v50
  %182 = vmatprep.subr.mxu0 0.0
  %183 = vmatpush1.msra.mxu0 %v47
  %184 = vmatprep.subr.mxu0 0.0
  %185 = vmatpush1.msra.mxu0 %v44
  %186 = vmatprep.subr.mxu0 0.0
  %187 = vmatpush1.msra.mxu0 %v41
  %188 = vmatprep.subr.mxu0 0.0
  %189 = vmatpush1.msra.mxu0 %v38
  %190 = vmatprep.subr.mxu0 0.0
  %191 = vmatpush1.msra.mxu0 %v35
  %192 = vmatprep.subr.mxu0 0.0
  %193 = vmatpush1.msra.mxu0 %v32
  %194 = vmatprep.subr.mxu0 0.0
  %195 = vmatpush1.msra.mxu0 %v29
  %196 = vmatprep.subr.mxu0 0.0
  %197 = vmatpush2.msra.mxu0 0.0
  %198 = vmatprep.subr.mxu0 0.0
  %199 = vmatpush2.msra.mxu0 0.0
  %200 = vmatprep.subr.mxu0 0.0
  %201 = vmatpush2.msra.mxu0 0.0
  %202 = vmatprep.subr.mxu0 0.0
  %203 = vmatpush2.msra.mxu0 0.0
  %204 = vmatprep.subr.mxu0 0.0
  %205 = vmatpush2.msra.mxu0 0.0
  %206 = vmatprep.subr.mxu0 0.0
  %207 = vmatpush2.msra.mxu0 0.0
  %208 = vmatprep.subr.mxu0 0.0
  %209 = vmatpush2.msra.mxu0 0.0
  %210 = vmatprep.subr.mxu0 0.0
  %211 = vmatpush2.msra.mxu0 0.0
  %212 = vmatprep.subr.mxu0 0.0
  %213 = vmatpush2.msra.mxu0 0.0
  %214 = vmatprep.subr.mxu0 0.0
  %215 = vmatpush2.msra.mxu0 0.0
  %216 = vmatprep.subr.mxu0 0.0
  %217 = vmatpush2.msra.mxu0 0.0
  %218 = vmatprep.subr.mxu0 0.0
  %219 = vmatpush2.msra.mxu0 0.0
  %220 = vmatprep.subr.mxu0 0.0
  %221 = vmatpush2.msra.mxu0 0.0
  %222 = vmatprep.subr.mxu0 0.0
  %223 = vmatpush2.msra.mxu0 0.0
  %224 = vmatprep.subr.mxu0 0.0
  %225 = vmatpush2.msra.mxu0 0.0
  %226 = vmatprep.subr.mxu0 0.0
  %227 = vmatpush2.msra.mxu0 0.0
  %228 = vmatprep.mubr.f32.mxu0 0.0
  %229 = vmatmul.mubr.f32.gmra.mxu0 %v76
  %v230 = vpop.f32.mrf.mxu0
  %v231 = vadd.f32 %v89, %v230
  %v232 = vpop.f32.mrf.mxu0
  %233 = vdwg.mxu0
  %v234 = vadd.f32 %v23, %v160
  %v235 = vadd.f32 %v24, %v162
  %v236 = vxor.u32 %v234, 2147483648
  %v237 = vxor.u32 %v235, 2147483648
  %v238 = vmul.f32 %v236, 1.442695
  %v239 = vpow.pop %v238
  %v240 = vmul.f32 %v237, 1.442695
  %v241 = vpow.pop %v240
  %v242 = vadd.f32 %v239, 1.0
  %v243 = vadd.f32 %v241, 1.0
  %v244 = vrcp.pop %v242
  %v245 = vmul.f32 1.0, %v244
  %v246 = vrcp.pop %v243
  %v247 = vmul.f32 1.0, %v246
  %v248 = vmul.f32 %v245, %v231
  %v249 = vadd.f32 %v25, %v248
  %v250 = vtanh.pop %v249
  %v251 = vsub.f32 1.0, %v247
  %v252 = vmul.f32 %v251, %v250
  %v253 = vmul.f32 %v247, %v76
  %v254 = vadd.f32 %v252, %v253
  %s255 = scalar_lea.vmem %s0, 24
  %v256 = vld [vmem:[%s255] sm:$0xff]
  %v257 = vld [vmem:[%s255 + $0x8] sm:$0xff]
  %v258 = vld [vmem:[%s255 + $0x10] sm:$0xff]
  %s259 = scalar_lea.vmem %s1, 8
  %v260 = vld [vmem:[%s259] sm:$0xff]
  %v261 = vmul.f32 %v254, %v260
  %262 = vmatprep.subr.mxu0 %v73
  %263 = vmatpush1.msra.mxu0 %v72
  %264 = vmatprep.subr.mxu0 %v70
  %265 = vmatpush1.msra.mxu0 %v69
  %266 = vmatprep.subr.mxu0 %v67
  %267 = vmatpush1.msra.mxu0 %v66
  %268 = vmatprep.subr.mxu0 %v64
  %269 = vmatpush1.msra.mxu0 %v63
  %270 = vmatprep.subr.mxu0 %v61
  %271 = vmatpush1.msra.mxu0 %v60
  %272 = vmatprep.subr.mxu0 %v58
  %273 = vmatpush1.msra.mxu0 %v57
  %274 = vmatprep.subr.mxu0 %v55
  %275 = vmatpush1.msra.mxu0 %v54
  %276 = vmatprep.subr.mxu0 %v52
  %277 = vmatpush1.msra.mxu0 %v51
  %278 = vmatprep.subr.mxu0 %v49
  %279 = vmatpush1.msra.mxu0 %v48
  %280 = vmatprep.subr.mxu0 %v46
  %281 = vmatpush1.msra.mxu0 %v45
  %282 = vmatprep.subr.mxu0 %v43
  %283 = vmatpush1.msra.mxu0 %v42
  %284 = vmatprep.subr.mxu0 %v40
  %285 = vmatpush1.msra.mxu0 %v39
  %286 = vmatprep.subr.mxu0 %v37
  %287 = vmatpush1.msra.mxu0 %v36
  %288 = vmatprep.subr.mxu0 %v34
  %289 = vmatpush1.msra.mxu0 %v33
  %290 = vmatprep.subr.mxu0 %v31
  %291 = vmatpush1.msra.mxu0 %v30
  %292 = vmatprep.subr.mxu0 %v28
  %293 = vmatpush1.msra.mxu0 %v27
  %294 = vmatprep.subr.mxu0 0.0
  %295 = vmatpush2.msra.mxu0 0.0
  %296 = vmatprep.subr.mxu0 0.0
  %297 = vmatpush2.msra.mxu0 0.0
  %298 = vmatprep.subr.mxu0 0.0
  %299 = vmatpush2.msra.mxu0 0.0
  %300 = vmatprep.subr.mxu0 0.0
  %301 = vmatpush2.msra.mxu0 0.0
  %302 = vmatprep.subr.mxu0 0.0
  %303 = vmatpush2.msra.mxu0 0.0
  %304 = vmatprep.subr.mxu0 0.0
  %305 = vmatpush2.msra.mxu0 0.0
  %306 = vmatprep.subr.mxu0 0.0
  %307 = vmatpush2.msra.mxu0 0.0
  %308 = vmatprep.subr.mxu0 0.0
  %309 = vmatpush2.msra.mxu0 0.0
  %310 = vmatprep.subr.mxu0 0.0
  %311 = vmatpush2.msra.mxu0 0.0
  %312 = vmatprep.subr.mxu0 0.0
  %313 = vmatpush2.msra.mxu0 0.0
  %314 = vmatprep.subr.mxu0 0.0
  %315 = vmatpush2.msra.mxu0 0.0
  %316 = vmatprep.subr.mxu0 0.0
  %317 = vmatpush2.msra.mxu0 0.0
  %318 = vmatprep.subr.mxu0 0.0
  %319 = vmatpush2.msra.mxu0 0.0
  %320 = vmatprep.subr.mxu0 0.0
  %321 = vmatpush2.msra.mxu0 0.0
  %322 = vmatprep.subr.mxu0 0.0
  %323 = vmatpush2.msra.mxu0 0.0
  %324 = vmatprep.subr.mxu0 0.0
  %325 = vmatpush2.msra.mxu0 0.0
  %326 = vmatprep.mubr.f32.mxu0 0.0
  %327 = vmatmul.mubr.f32.gmra.mxu0 %v261
  %v328 = vpop.f32.mrf.mxu0
  %v329 = vadd.f32 %v81, %v328
  %v330 = vpop.f32.mrf.mxu0
  %v331 = vadd.f32 %v85, %v330
  %332 = vdwg.mxu0
  %333 = vmatprep.subr.mxu0 0.0
  %334 = vmatpush1.msra.mxu0 %v74
  %335 = vmatprep.subr.mxu0 0.0
  %336 = vmatpush1.msra.mxu0 %v71
  %337 = vmatprep.subr.mxu0 0.0
  %338 = vmatpush1.msra.mxu0 %v68
  %339 = vmatprep.subr.mxu0 0.0
  %340 = vmatpush1.msra.mxu0 %v65
  %341 = vmatprep.subr.mxu0 0.0
  %342 = vmatpush1.msra.mxu0 %v62
  %343 = vmatprep.subr.mxu0 0.0
  %344 = vmatpush1.msra.mxu0 %v59
  %345 = vmatprep.subr.mxu0 0.0
  %346 = vmatpush1.msra.mxu0 %v56
  %347 = vmatprep.subr.mxu0 0.0
  %348 = vmatpush1.msra.mxu0 %v53
  %349 = vmatprep.subr.mxu0 0.0
  %350 = vmatpush1.msra.mxu0 %v50
  %351 = vmatprep.subr.mxu0 0.0
  %352 = vmatpush1.msra.mxu0 %v47
  %353 = vmatprep.subr.mxu0 0.0
  %354 = vmatpush1.msra.mxu0 %v44
  %355 = vmatprep.subr.mxu0 0.0
  %356 = vmatpush1.msra.mxu0 %v41
  %357 = vmatprep.subr.mxu0 0.0
  %358 = vmatpush1.msra.mxu0 %v38
  %359 = vmatprep.subr.mxu0 0.0
  %360 = vmatpush1.msra.mxu0 %v35
  %361 = vmatprep.subr.mxu0 0.0
  %362 = vmatpush1.msra.mxu0 %v32
  %363 = vmatprep.subr.mxu0 0.0
  %364 = vmatpush1.msra.mxu0 %v29
  %365 = vmatprep.subr.mxu0 0.0
  %366 = vmatpush2.msra.mxu0 0.0
  %367 = vmatprep.subr.mxu0 0.0
  %368 = vmatpush2.msra.mxu0 0.0
  %369 = vmatprep.subr.mxu0 0.0
  %370 = vmatpush2.msra.mxu0 0.0
  %371 = vmatprep.subr.mxu0 0.0
  %372 = vmatpush2.msra.mxu0 0.0
  %373 = vmatprep.subr.mxu0 0.0
  %374 = vmatpush2.msra.mxu0 0.0
  %375 = vmatprep.subr.mxu0 0.0
  %376 = vmatpush2.msra.mxu0 0.0
  %377 = vmatprep.subr.mxu0 0.0
  %378 = vmatpush2.msra.mxu0 0.0
  %379 = vmatprep.subr.mxu0 0.0
  %380 = vmatpush2.msra.mxu0 0.0
  %381 = vmatprep.subr.mxu0 0.0
  %382 = vmatpush2.msra.mxu0 0.0
  %383 = vmatprep.subr.mxu0 0.0
  %384 = vmatpush2.msra.mxu0 0.0
  %385 = vmatprep.subr.mxu0 0.0
  %386 = vmatpush2.msra.mxu0 0.0
  %387 = vmatprep.subr.mxu0 0.0
  %388 = vmatpush2.msra.mxu0 0.0
  %389 = vmatprep.subr.mxu0 0.0
  %390 = vmatpush2.msra.mxu0 0.0
  %391 = vmatprep.subr.mxu0 0.0
  %392 = vmatpush2.msra.mxu0 0.0
  %393 = vmatprep.subr.mxu0 0.0
  %394 = vmatpush2.msra.mxu0 0.0
  %395 = vmatprep.subr.mxu0 0.0
  %396 = vmatpush2.msra.mxu0 0.0
  %397 = vmatprep.mubr.f32.mxu0 0.0
  %398 = vmatmul.mubr.f32.gmra.mxu0 %v261
  %v399 = vpop.f32.mrf.mxu0
  %v400 = vadd.f32 %v89, %v399
  %v401 = vpop.f32.mrf.mxu0
  %402 = vdwg.mxu0
  %v403 = vadd.f32 %v256, %v329
  %v404 = vadd.f32 %v257, %v331
  %v405 = vxor.u32 %v403, 2147483648
  %v406 = vxor.u32 %v404, 2147483648
  %v407 = vmul.f32 %v405, 1.442695
  %v408 = vpow.pop %v407
  %v409 = vmul.f32 %v406, 1.442695
  %v410 = vpow.pop %v409
  %v411 = vadd.f32 %v408, 1.0
  %v412 = vadd.f32 %v410, 1.0
  %v413 = vrcp.pop %v411
  %v414 = vmul.f32 1.0, %v413
  %v415 = vrcp.pop %v412
  %v416 = vmul.f32 1.0, %v415
  %v417 = vmul.f32 %v414, %v400
  %v418 = vadd.f32 %v258, %v417
  %v419 = vtanh.pop %v418
  %v420 = vsub.f32 1.0, %v416
  %v421 = vmul.f32 %v420, %v419
  %v422 = vmul.f32 %v416, %v261
  %v423 = vadd.f32 %v421, %v422
  %s424 = scalar_lea.vmem %s0, 48
  %v425 = vld [vmem:[%s424] sm:$0xff]
  %v426 = vld [vmem:[%s424 + $0x8] sm:$0xff]
  %v427 = vld [vmem:[%s424 + $0x10] sm:$0xff]
  %s428 = scalar_lea.vmem %s1, 16
  %v429 = vld [vmem:[%s428] sm:$0xff]
  %v430 = vmul.f32 %v423, %v429
  %431 = vmatprep.subr.mxu0 %v73
  %432 = vmatpush1.msra.mxu0 %v72
  %433 = vmatprep.subr.mxu0 %v70
  %434 = vmatpush1.msra.mxu0 %v69
  %435 = vmatprep.subr.mxu0 %v67
  %436 = vmatpush1.msra.mxu0 %v66
  %437 = vmatprep.subr.mxu0 %v64
  %438 = vmatpush1.msra.mxu0 %v63
  %439 = vmatprep.subr.mxu0 %v61
  %440 = vmatpush1.msra.mxu0 %v60
  %441 = vmatprep.subr.mxu0 %v58
  %442 = vmatpush1.msra.mxu0 %v57
  %443 = vmatprep.subr.mxu0 %v55
  %444 = vmatpush1.msra.mxu0 %v54
  %445 = vmatprep.subr.mxu0 %v52
  %446 = vmatpush1.msra.mxu0 %v51
  %447 = vmatprep.subr.mxu0 %v49
  %448 = vmatpush1.msra.mxu0 %v48
  %449 = vmatprep.subr.mxu0 %v46
  %450 = vmatpush1.msra.mxu0 %v45
  %451 = vmatprep.subr.mxu0 %v43
  %452 = vmatpush1.msra.mxu0 %v42
  %453 = vmatprep.subr.mxu0 %v40
  %454 = vmatpush1.msra.mxu0 %v39
  %455 = vmatprep.subr.mxu0 %v37
  %456 = vmatpush1.msra.mxu0 %v36
  %457 = vmatprep.subr.mxu0 %v34
  %458 = vmatpush1.msra.mxu0 %v33
  %459 = vmatprep.subr.mxu0 %v31
  %460 = vmatpush1.msra.mxu0 %v30
  %461 = vmatprep.subr.mxu0 %v28
  %462 = vmatpush1.msra.mxu0 %v27
  %463 = vmatprep.subr.mxu0 0.0
  %464 = vmatpush2.msra.mxu0 0.0
  %465 = vmatprep.subr.mxu0 0.0
  %466 = vmatpush2.msra.mxu0 0.0
  %467 = vmatprep.subr.mxu0 0.0
  %468 = vmatpush2.msra.mxu0 0.0
  %469 = vmatprep.subr.mxu0 0.0
  %470 = vmatpush2.msra.mxu0 0.0
  %471 = vmatprep.subr.mxu0 0.0
  %472 = vmatpush2.msra.mxu0 0.0
  %473 = vmatprep.subr.mxu0 0.0
  %474 = vmatpush2.msra.mxu0 0.0
  %475 = vmatprep.subr.mxu0 0.0
  %476 = vmatpush2.msra.mxu0 0.0
  %477 = vmatprep.subr.mxu0 0.0
  %478 = vmatpush2.msra.mxu0 0.0
  %479 = vmatprep.subr.mxu0 0.0
  %480 = vmatpush2.msra.mxu0 0.0
  %481 = vmatprep.subr.mxu0 0.0
  %482 = vmatpush2.msra.mxu0 0.0
  %483 = vmatprep.subr.mxu0 0.0
  %484 = vmatpush2.msra.mxu0 0.0
  %485 = vmatprep.subr.mxu0 0.0
  %486 = vmatpush2.msra.mxu0 0.0
  %487 = vmatprep.subr.mxu0 0.0
  %488 = vmatpush2.msra.mxu0 0.0
  %489 = vmatprep.subr.mxu0 0.0
  %490 = vmatpush2.msra.mxu0 0.0
  %491 = vmatprep.subr.mxu0 0.0
  %492 = vmatpush2.msra.mxu0 0.0
  %493 = vmatprep.subr.mxu0 0.0
  %494 = vmatpush2.msra.mxu0 0.0
  %495 = vmatprep.mubr.f32.mxu0 0.0
  %496 = vmatmul.mubr.f32.gmra.mxu0 %v430
  %v497 = vpop.f32.mrf.mxu0
  %v498 = vadd.f32 %v81, %v497
  %v499 = vpop.f32.mrf.mxu0
  %v500 = vadd.f32 %v85, %v499
  %501 = vdwg.mxu0
  %502 = vmatprep.subr.mxu0 0.0
  %503 = vmatpush1.msra.mxu0 %v74
  %504 = vmatprep.subr.mxu0 0.0
  %505 = vmatpush1.msra.mxu0 %v71
  %506 = vmatprep.subr.mxu0 0.0
  %507 = vmatpush1.msra.mxu0 %v68
  %508 = vmatprep.subr.mxu0 0.0
  %509 = vmatpush1.msra.mxu0 %v65
  %510 = vmatprep.subr.mxu0 0.0
  %511 = vmatpush1.msra.mxu0 %v62
  %512 = vmatprep.subr.mxu0 0.0
  %513 = vmatpush1.msra.mxu0 %v59
  %514 = vmatprep.subr.mxu0 0.0
  %515 = vmatpush1.msra.mxu0 %v56
  %516 = vmatprep.subr.mxu0 0.0
  %517 = vmatpush1.msra.mxu0 %v53
  %518 = vmatprep.subr.mxu0 0.0
  %519 = vmatpush1.msra.mxu0 %v50
  %520 = vmatprep.subr.mxu0 0.0
  %521 = vmatpush1.msra.mxu0 %v47
  %522 = vmatprep.subr.mxu0 0.0
  %523 = vmatpush1.msra.mxu0 %v44
  %524 = vmatprep.subr.mxu0 0.0
  %525 = vmatpush1.msra.mxu0 %v41
  %526 = vmatprep.subr.mxu0 0.0
  %527 = vmatpush1.msra.mxu0 %v38
  %528 = vmatprep.subr.mxu0 0.0
  %529 = vmatpush1.msra.mxu0 %v35
  %530 = vmatprep.subr.mxu0 0.0
  %531 = vmatpush1.msra.mxu0 %v32
  %532 = vmatprep.subr.mxu0 0.0
  %533 = vmatpush1.msra.mxu0 %v29
  %534 = vmatprep.subr.mxu0 0.0
  %535 = vmatpush2.msra.mxu0 0.0
  %536 = vmatprep.subr.mxu0 0.0
  %537 = vmatpush2.msra.mxu0 0.0
  %538 = vmatprep.subr.mxu0 0.0
  %539 = vmatpush2.msra.mxu0 0.0
  %540 = vmatprep.subr.mxu0 0.0
  %541 = vmatpush2.msra.mxu0 0.0
  %542 = vmatprep.subr.mxu0 0.0
  %543 = vmatpush2.msra.mxu0 0.0
  %544 = vmatprep.subr.mxu0 0.0
  %545 = vmatpush2.msra.mxu0 0.0
  %546 = vmatprep.subr.mxu0 0.0
  %547 = vmatpush2.msra.mxu0 0.0
  %548 = vmatprep.subr.mxu0 0.0
  %549 = vmatpush2.msra.mxu0 0.0
  %550 = vmatprep.subr.mxu0 0.0
  %551 = vmatpush2.msra.mxu0 0.0
  %552 = vmatprep.subr.mxu0 0.0
  %553 = vmatpush2.msra.mxu0 0.0
  %554 = vmatprep.subr.mxu0 0.0
  %555 = vmatpush2.msra.mxu0 0.0
  %556 = vmatprep.subr.mxu0 0.0
  %557 = vmatpush2.msra.mxu0 0.0
  %558 = vmatprep.subr.mxu0 0.0
  %559 = vmatpush2.msra.mxu0 0.0
  %560 = vmatprep.subr.mxu0 0.0
  %561 = vmatpush2.msra.mxu0 0.0
  %562 = vmatprep.subr.mxu0 0.0
  %563 = vmatpush2.msra.mxu0 0.0
  %564 = vmatprep.subr.mxu0 0.0
  %565 = vmatpush2.msra.mxu0 0.0
  %566 = vmatprep.mubr.f32.mxu0 0.0
  %567 = vmatmul.mubr.f32.gmra.mxu0 %v430
  %v568 = vpop.f32.mrf.mxu0
  %v569 = vadd.f32 %v89, %v568
  %v570 = vpop.f32.mrf.mxu0
  %571 = vdwg.mxu0
  %v572 = vadd.f32 %v425, %v498
  %v573 = vadd.f32 %v426, %v500
  %v574 = vxor.u32 %v572, 2147483648
  %v575 = vxor.u32 %v573, 2147483648
  %v576 = vmul.f32 %v574, 1.442695
  %v577 = vpow.pop %v576
  %v578 = vmul.f32 %v575, 1.442695
  %v579 = vpow.pop %v578
  %v580 = vadd.f32 %v577, 1.0
  %v581 = vadd.f32 %v579, 1.0
  %v582 = vrcp.pop %v580
  %v583 = vmul.f32 1.0, %v582
  %v584 = vrcp.pop %v581
  %v585 = vmul.f32 1.0, %v584
  %v586 = vmul.f32 %v583, %v569
  %v587 = vadd.f32 %v427, %v586
  %v588 = vtanh.pop %v587
  %v589 = vsub.f32 1.0, %v585
  %v590 = vmul.f32 %v589, %v588
  %v591 = vmul.f32 %v585, %v430
  %v592 = vadd.f32 %v590, %v591
  %s593 = scalar_lea.vmem %s0, 72
  %v594 = vld [vmem:[%s593] sm:$0xff]
  %v595 = vld [vmem:[%s593 + $0x8] sm:$0xff]
  %v596 = vld [vmem:[%s593 + $0x10] sm:$0xff]
  %s597 = scalar_lea.vmem %s1, 24
  %v598 = vld [vmem:[%s597] sm:$0xff]
  %v599 = vmul.f32 %v592, %v598
  %600 = vmatprep.subr.mxu0 %v73
  %601 = vmatpush1.msra.mxu0 %v72
  %602 = vmatprep.subr.mxu0 %v70
  %603 = vmatpush1.msra.mxu0 %v69
  %604 = vmatprep.subr.mxu0 %v67
  %605 = vmatpush1.msra.mxu0 %v66
  %606 = vmatprep.subr.mxu0 %v64
  %607 = vmatpush1.msra.mxu0 %v63
  %608 = vmatprep.subr.mxu0 %v61
  %609 = vmatpush1.msra.mxu0 %v60
  %610 = vmatprep.subr.mxu0 %v58
  %611 = vmatpush1.msra.mxu0 %v57
  %612 = vmatprep.subr.mxu0 %v55
  %613 = vmatpush1.msra.mxu0 %v54
  %614 = vmatprep.subr.mxu0 %v52
  %615 = vmatpush1.msra.mxu0 %v51
  %616 = vmatprep.subr.mxu0 %v49
  %617 = vmatpush1.msra.mxu0 %v48
  %618 = vmatprep.subr.mxu0 %v46
  %619 = vmatpush1.msra.mxu0 %v45
  %620 = vmatprep.subr.mxu0 %v43
  %621 = vmatpush1.msra.mxu0 %v42
  %622 = vmatprep.subr.mxu0 %v40
  %623 = vmatpush1.msra.mxu0 %v39
  %624 = vmatprep.subr.mxu0 %v37
  %625 = vmatpush1.msra.mxu0 %v36
  %626 = vmatprep.subr.mxu0 %v34
  %627 = vmatpush1.msra.mxu0 %v33
  %628 = vmatprep.subr.mxu0 %v31
  %629 = vmatpush1.msra.mxu0 %v30
  %630 = vmatprep.subr.mxu0 %v28
  %631 = vmatpush1.msra.mxu0 %v27
  %632 = vmatprep.subr.mxu0 0.0
  %633 = vmatpush2.msra.mxu0 0.0
  %634 = vmatprep.subr.mxu0 0.0
  %635 = vmatpush2.msra.mxu0 0.0
  %636 = vmatprep.subr.mxu0 0.0
  %637 = vmatpush2.msra.mxu0 0.0
  %638 = vmatprep.subr.mxu0 0.0
  %639 = vmatpush2.msra.mxu0 0.0
  %640 = vmatprep.subr.mxu0 0.0
  %641 = vmatpush2.msra.mxu0 0.0
  %642 = vmatprep.subr.mxu0 0.0
  %643 = vmatpush2.msra.mxu0 0.0
  %644 = vmatprep.subr.mxu0 0.0
  %645 = vmatpush2.msra.mxu0 0.0
  %646 = vmatprep.subr.mxu0 0.0
  %647 = vmatpush2.msra.mxu0 0.0
  %648 = vmatprep.subr.mxu0 0.0
  %649 = vmatpush2.msra.mxu0 0.0
  %650 = vmatprep.subr.mxu0 0.0
  %651 = vmatpush2.msra.mxu0 0.0
  %652 = vmatprep.subr.mxu0 0.0
  %653 = vmatpush2.msra.mxu0 0.0
  %654 = vmatprep.subr.mxu0 0.0
  %655 = vmatpush2.msra.mxu0 0.0
  %656 = vmatprep.subr.mxu0 0.0
  %657 = vmatpush2.msra.mxu0 0.0
  %658 = vmatprep.subr.mxu0 0.0
  %659 = vmatpush2.msra.mxu0 0.0
  %660 = vmatprep.subr.mxu0 0.0
  %661 = vmatpush2.msra.mxu0 0.0
  %662 = vmatprep.subr.mxu0 0.0
  %663 = vmatpush2.msra.mxu0 0.0
  %664 = vmatprep.mubr.f32.mxu0 0.0
  %665 = vmatmul.mubr.f32.gmra.mxu0 %v599
  %v666 = vpop.f32.mrf.mxu0
  %v667 = vadd.f32 %v81, %v666
  %v668 = vpop.f32.mrf.mxu0
  %v669 = vadd.f32 %v85, %v668
  %670 = vdwg.mxu0
  %671 = vmatprep.subr.mxu0 0.0
  %672 = vmatpush1.msra.mxu0 %v74
  %673 = vmatprep.subr.mxu0 0.0
  %674 = vmatpush1.msra.mxu0 %v71
  %675 = vmatprep.subr.mxu0 0.0
  %676 = vmatpush1.msra.mxu0 %v68
  %677 = vmatprep.subr.mxu0 0.0
  %678 = vmatpush1.msra.mxu0 %v65
  %679 = vmatprep.subr.mxu0 0.0
  %680 = vmatpush1.msra.mxu0 %v62
  %681 = vmatprep.subr.mxu0 0.0
  %682 = vmatpush1.msra.mxu0 %v59
  %683 = vmatprep.subr.mxu0 0.0
  %684 = vmatpush1.msra.mxu0 %v56
  %685 = vmatprep.subr.mxu0 0.0
  %686 = vmatpush1.msra.mxu0 %v53
  %687 = vmatprep.subr.mxu0 0.0
  %688 = vmatpush1.msra.mxu0 %v50
  %689 = vmatprep.subr.mxu0 0.0
  %690 = vmatpush1.msra.mxu0 %v47
  %691 = vmatprep.subr.mxu0 0.0
  %692 = vmatpush1.msra.mxu0 %v44
  %693 = vmatprep.subr.mxu0 0.0
  %694 = vmatpush1.msra.mxu0 %v41
  %695 = vmatprep.subr.mxu0 0.0
  %696 = vmatpush1.msra.mxu0 %v38
  %697 = vmatprep.subr.mxu0 0.0
  %698 = vmatpush1.msra.mxu0 %v35
  %699 = vmatprep.subr.mxu0 0.0
  %700 = vmatpush1.msra.mxu0 %v32
  %701 = vmatprep.subr.mxu0 0.0
  %702 = vmatpush1.msra.mxu0 %v29
  %703 = vmatprep.subr.mxu0 0.0
  %704 = vmatpush2.msra.mxu0 0.0
  %705 = vmatprep.subr.mxu0 0.0
  %706 = vmatpush2.msra.mxu0 0.0
  %707 = vmatprep.subr.mxu0 0.0
  %708 = vmatpush2.msra.mxu0 0.0
  %709 = vmatprep.subr.mxu0 0.0
  %710 = vmatpush2.msra.mxu0 0.0
  %711 = vmatprep.subr.mxu0 0.0
  %712 = vmatpush2.msra.mxu0 0.0
  %713 = vmatprep.subr.mxu0 0.0
  %714 = vmatpush2.msra.mxu0 0.0
  %715 = vmatprep.subr.mxu0 0.0
  %716 = vmatpush2.msra.mxu0 0.0
  %717 = vmatprep.subr.mxu0 0.0
  %718 = vmatpush2.msra.mxu0 0.0
  %719 = vmatprep.subr.mxu0 0.0
  %720 = vmatpush2.msra.mxu0 0.0
  %721 = vmatprep.subr.mxu0 0.0
  %722 = vmatpush2.msra.mxu0 0.0
  %723 = vmatprep.subr.mxu0 0.0
  %724 = vmatpush2.msra.mxu0 0.0
  %725 = vmatprep.subr.mxu0 0.0
  %726 = vmatpush2.msra.mxu0 0.0
  %727 = vmatprep.subr.mxu0 0.0
  %728 = vmatpush2.msra.mxu0 0.0
  %729 = vmatprep.subr.mxu0 0.0
  %730 = vmatpush2.msra.mxu0 0.0
  %731 = vmatprep.subr.mxu0 0.0
  %732 = vmatpush2.msra.mxu0 0.0
  %733 = vmatprep.subr.mxu0 0.0
  %734 = vmatpush2.msra.mxu0 0.0
  %735 = vmatprep.mubr.f32.mxu0 0.0
  %736 = vmatmul.mubr.f32.gmra.mxu0 %v599
  %v737 = vpop.f32.mrf.mxu0
  %v738 = vadd.f32 %v89, %v737
  %v739 = vpop.f32.mrf.mxu0
  %740 = vdwg.mxu0
  %v741 = vadd.f32 %v594, %v667
  %v742 = vadd.f32 %v595, %v669
  %v743 = vxor.u32 %v741, 2147483648
  %v744 = vxor.u32 %v742, 2147483648
  %v745 = vmul.f32 %v743, 1.442695
  %v746 = vpow.pop %v745
  %v747 = vmul.f32 %v744, 1.442695
  %v748 = vpow.pop %v747
  %v749 = vadd.f32 %v746, 1.0
  %v750 = vadd.f32 %v748, 1.0
  %v751 = vrcp.pop %v749
  %v752 = vmul.f32 1.0, %v751
  %v753 = vrcp.pop %v750
  %v754 = vmul.f32 1.0, %v753
  %v755 = vmul.f32 %v752, %v738
  %v756 = vadd.f32 %v596, %v755
  %v757 = vtanh.pop %v756
  %v758 = vsub.f32 1.0, %v754
  %v759 = vmul.f32 %v758, %v757
  %v760 = vmul.f32 %v754, %v599
  %v761 = vadd.f32 %v759, %v760
  %s762 = scalar_lea.vmem %s0, 96
  %v763 = vld [vmem:[%s762] sm:$0xff]
  %v764 = vld [vmem:[%s762 + $0x8] sm:$0xff]
  %v765 = vld [vmem:[%s762 + $0x10] sm:$0xff]
  %s766 = scalar_lea.vmem %s1, 32
  %v767 = vld [vmem:[%s766] sm:$0xff]
  %v768 = vmul.f32 %v761, %v767
  %769 = vmatprep.subr.mxu0 %v73
  %770 = vmatpush1.msra.mxu0 %v72
  %771 = vmatprep.subr.mxu0 %v70
  %772 = vmatpush1.msra.mxu0 %v69
  %773 = vmatprep.subr.mxu0 %v67
  %774 = vmatpush1.msra.mxu0 %v66
  %775 = vmatprep.subr.mxu0 %v64
  %776 = vmatpush1.msra.mxu0 %v63
  %777 = vmatprep.subr.mxu0 %v61
  %778 = vmatpush1.msra.mxu0 %v60
  %779 = vmatprep.subr.mxu0 %v58
  %780 = vmatpush1.msra.mxu0 %v57
  %781 = vmatprep.subr.mxu0 %v55
  %782 = vmatpush1.msra.mxu0 %v54
  %783 = vmatprep.subr.mxu0 %v52
  %784 = vmatpush1.msra.mxu0 %v51
  %785 = vmatprep.subr.mxu0 %v49
  %786 = vmatpush1.msra.mxu0 %v48
  %787 = vmatprep.subr.mxu0 %v46
  %788 = vmatpush1.msra.mxu0 %v45
  %789 = vmatprep.subr.mxu0 %v43
  %790 = vmatpush1.msra.mxu0 %v42
  %791 = vmatprep.subr.mxu0 %v40
  %792 = vmatpush1.msra.mxu0 %v39
  %793 = vmatprep.subr.mxu0 %v37
  %794 = vmatpush1.msra.mxu0 %v36
  %795 = vmatprep.subr.mxu0 %v34
  %796 = vmatpush1.msra.mxu0 %v33
  %797 = vmatprep.subr.mxu0 %v31
  %798 = vmatpush1.msra.mxu0 %v30
  %799 = vmatprep.subr.mxu0 %v28
  %800 = vmatpush1.msra.mxu0 %v27
  %801 = vmatprep.subr.mxu0 0.0
  %802 = vmatpush2.msra.mxu0 0.0
  %803 = vmatprep.subr.mxu0 0.0
  %804 = vmatpush2.msra.mxu0 0.0
  %805 = vmatprep.subr.mxu0 0.0
  %806 = vmatpush2.msra.mxu0 0.0
  %807 = vmatprep.subr.mxu0 0.0
  %808 = vmatpush2.msra.mxu0 0.0
  %809 = vmatprep.subr.mxu0 0.0
  %810 = vmatpush2.msra.mxu0 0.0
  %811 = vmatprep.subr.mxu0 0.0
  %812 = vmatpush2.msra.mxu0 0.0
  %813 = vmatprep.subr.mxu0 0.0
  %814 = vmatpush2.msra.mxu0 0.0
  %815 = vmatprep.subr.mxu0 0.0
  %816 = vmatpush2.msra.mxu0 0.0
  %817 = vmatprep.subr.mxu0 0.0
  %818 = vmatpush2.msra.mxu0 0.0
  %819 = vmatprep.subr.mxu0 0.0
  %820 = vmatpush2.msra.mxu0 0.0
  %821 = vmatprep.subr.mxu0 0.0
  %822 = vmatpush2.msra.mxu0 0.0
  %823 = vmatprep.subr.mxu0 0.0
  %824 = vmatpush2.msra.mxu0 0.0
  %825 = vmatprep.subr.mxu0 0.0
  %826 = vmatpush2.msra.mxu0 0.0
  %827 = vmatprep.subr.mxu0 0.0
  %828 = vmatpush2.msra.mxu0 0.0
  %829 = vmatprep.subr.mxu0 0.0
  %830 = vmatpush2.msra.mxu0 0.0
  %831 = vmatprep.subr.mxu0 0.0
  %832 = vmatpush2.msra.mxu0 0.0
  %833 = vmatprep.mubr.f32.mxu0 0.0
  %834 = vmatmul.mubr.f32.gmra.mxu0 %v768
  %v835 = vpop.f32.mrf.mxu0
  %v836 = vadd.f32 %v81, %v835
  %v837 = vpop.f32.mrf.mxu0
  %v838 = vadd.f32 %v85, %v837
  %839 = vdwg.mxu0
  %840 = vmatprep.subr.mxu0 0.0
  %841 = vmatpush1.msra.mxu0 %v74
  %842 = vmatprep.subr.mxu0 0.0
  %843 = vmatpush1.msra.mxu0 %v71
  %844 = vmatprep.subr.mxu0 0.0
  %845 = vmatpush1.msra.mxu0 %v68
  %846 = vmatprep.subr.mxu0 0.0
  %847 = vmatpush1.msra.mxu0 %v65
  %848 = vmatprep.subr.mxu0 0.0
  %849 = vmatpush1.msra.mxu0 %v62
  %850 = vmatprep.subr.mxu0 0.0
  %851 = vmatpush1.msra.mxu0 %v59
  %852 = vmatprep.subr.mxu0 0.0
  %853 = vmatpush1.msra.mxu0 %v56
  %854 = vmatprep.subr.mxu0 0.0
  %855 = vmatpush1.msra.mxu0 %v53
  %856 = vmatprep.subr.mxu0 0.0
  %857 = vmatpush1.msra.mxu0 %v50
  %858 = vmatprep.subr.mxu0 0.0
  %859 = vmatpush1.msra.mxu0 %v47
  %860 = vmatprep.subr.mxu0 0.0
  %861 = vmatpush1.msra.mxu0 %v44
  %862 = vmatprep.subr.mxu0 0.0
  %863 = vmatpush1.msra.mxu0 %v41
  %864 = vmatprep.subr.mxu0 0.0
  %865 = vmatpush1.msra.mxu0 %v38
  %866 = vmatprep.subr.mxu0 0.0
  %867 = vmatpush1.msra.mxu0 %v35
  %868 = vmatprep.subr.mxu0 0.0
  %869 = vmatpush1.msra.mxu0 %v32
  %870 = vmatprep.subr.mxu0 0.0
  %871 = vmatpush1.msra.mxu0 %v29
  %872 = vmatprep.subr.mxu0 0.0
  %873 = vmatpush2.msra.mxu0 0.0
  %874 = vmatprep.subr.mxu0 0.0
  %875 = vmatpush2.msra.mxu0 0.0
  %876 = vmatprep.subr.mxu0 0.0
  %877 = vmatpush2.msra.mxu0 0.0
  %878 = vmatprep.subr.mxu0 0.0
  %879 = vmatpush2.msra.mxu0 0.0
  %880 = vmatprep.subr.mxu0 0.0
  %881 = vmatpush2.msra.mxu0 0.0
  %882 = vmatprep.subr.mxu0 0.0
  %883 = vmatpush2.msra.mxu0 0.0
  %884 = vmatprep.subr.mxu0 0.0
  %885 = vmatpush2.msra.mxu0 0.0
  %886 = vmatprep.subr.mxu0 0.0
  %887 = vmatpush2.msra.mxu0 0.0
  %888 = vmatprep.subr.mxu0 0.0
  %889 = vmatpush2.msra.mxu0 0.0
  %890 = vmatprep.subr.mxu0 0.0
  %891 = vmatpush2.msra.mxu0 0.0
  %892 = vmatprep.subr.mxu0 0.0
  %893 = vmatpush2.msra.mxu0 0.0
  %894 = vmatprep.subr.mxu0 0.0
  %895 = vmatpush2.msra.mxu0 0.0
  %896 = vmatprep.subr.mxu0 0.0
  %897 = vmatpush2.msra.mxu0 0.0
  %898 = vmatprep.subr.mxu0 0.0
  %899 = vmatpush2.msra.mxu0 0.0
  %900 = vmatprep.subr.mxu0 0.0
  %901 = vmatpush2.msra.mxu0 0.0
  %902 = vmatprep.subr.mxu0 0.0
  %903 = vmatpush2.msra.mxu0 0.0
  %904 = vmatprep.mubr.f32.mxu0 0.0
  %905 = vmatmul.mubr.f32.gmra.mxu0 %v768
  %v906 = vpop.f32.mrf.mxu0
  %v907 = vadd.f32 %v89, %v906
  %v908 = vpop.f32.mrf.mxu0
  %909 = vdwg.mxu0
  %v910 = vadd.f32 %v763, %v836
  %v911 = vadd.f32 %v764, %v838
  %v912 = vxor.u32 %v910, 2147483648
  %v913 = vxor.u32 %v911, 2147483648
  %v914 = vmul.f32 %v912, 1.442695
  %v915 = vpow.pop %v914
  %v916 = vmul.f32 %v913, 1.442695
  %v917 = vpow.pop %v916
  %v918 = vadd.f32 %v915, 1.0
  %v919 = vadd.f32 %v917, 1.0
  %v920 = vrcp.pop %v918
  %v921 = vmul.f32 1.0, %v920
  %v922 = vrcp.pop %v919
  %v923 = vmul.f32 1.0, %v922
  %v924 = vmul.f32 %v921, %v907
  %v925 = vadd.f32 %v765, %v924
  %v926 = vtanh.pop %v925
  %v927 = vsub.f32 1.0, %v923
  %v928 = vmul.f32 %v927, %v926
  %v929 = vmul.f32 %v923, %v768
  %v930 = vadd.f32 %v928, %v929
  %s931 = scalar_lea.vmem %s0, 120
  %v932 = vld [vmem:[%s931] sm:$0xff]
  %v933 = vld [vmem:[%s931 + $0x8] sm:$0xff]
  %v934 = vld [vmem:[%s931 + $0x10] sm:$0xff]
  %s935 = scalar_lea.vmem %s1, 40
  %v936 = vld [vmem:[%s935] sm:$0xff]
  %v937 = vmul.f32 %v930, %v936
  %938 = vmatprep.subr.mxu0 %v73
  %939 = vmatpush1.msra.mxu0 %v72
  %940 = vmatprep.subr.mxu0 %v70
  %941 = vmatpush1.msra.mxu0 %v69
  %942 = vmatprep.subr.mxu0 %v67
  %943 = vmatpush1.msra.mxu0 %v66
  %944 = vmatprep.subr.mxu0 %v64
  %945 = vmatpush1.msra.mxu0 %v63
  %946 = vmatprep.subr.mxu0 %v61
  %947 = vmatpush1.msra.mxu0 %v60
  %948 = vmatprep.subr.mxu0 %v58
  %949 = vmatpush1.msra.mxu0 %v57
  %950 = vmatprep.subr.mxu0 %v55
  %951 = vmatpush1.msra.mxu0 %v54
  %952 = vmatprep.subr.mxu0 %v52
  %953 = vmatpush1.msra.mxu0 %v51
  %954 = vmatprep.subr.mxu0 %v49
  %955 = vmatpush1.msra.mxu0 %v48
  %956 = vmatprep.subr.mxu0 %v46
  %957 = vmatpush1.msra.mxu0 %v45
  %958 = vmatprep.subr.mxu0 %v43
  %959 = vmatpush1.msra.mxu0 %v42
  %960 = vmatprep.subr.mxu0 %v40
  %961 = vmatpush1.msra.mxu0 %v39
  %962 = vmatprep.subr.mxu0 %v37
  %963 = vmatpush1.msra.mxu0 %v36
  %964 = vmatprep.subr.mxu0 %v34
  %965 = vmatpush1.msra.mxu0 %v33
  %966 = vmatprep.subr.mxu0 %v31
  %967 = vmatpush1.msra.mxu0 %v30
  %968 = vmatprep.subr.mxu0 %v28
  %969 = vmatpush1.msra.mxu0 %v27
  %970 = vmatprep.subr.mxu0 0.0
  %971 = vmatpush2.msra.mxu0 0.0
  %972 = vmatprep.subr.mxu0 0.0
  %973 = vmatpush2.msra.mxu0 0.0
  %974 = vmatprep.subr.mxu0 0.0
  %975 = vmatpush2.msra.mxu0 0.0
  %976 = vmatprep.subr.mxu0 0.0
  %977 = vmatpush2.msra.mxu0 0.0
  %978 = vmatprep.subr.mxu0 0.0
  %979 = vmatpush2.msra.mxu0 0.0
  %980 = vmatprep.subr.mxu0 0.0
  %981 = vmatpush2.msra.mxu0 0.0
  %982 = vmatprep.subr.mxu0 0.0
  %983 = vmatpush2.msra.mxu0 0.0
  %984 = vmatprep.subr.mxu0 0.0
  %985 = vmatpush2.msra.mxu0 0.0
  %986 = vmatprep.subr.mxu0 0.0
  %987 = vmatpush2.msra.mxu0 0.0
  %988 = vmatprep.subr.mxu0 0.0
  %989 = vmatpush2.msra.mxu0 0.0
  %990 = vmatprep.subr.mxu0 0.0
  %991 = vmatpush2.msra.mxu0 0.0
  %992 = vmatprep.subr.mxu0 0.0
  %993 = vmatpush2.msra.mxu0 0.0
  %994 = vmatprep.subr.mxu0 0.0
  %995 = vmatpush2.msra.mxu0 0.0
  %996 = vmatprep.subr.mxu0 0.0
  %997 = vmatpush2.msra.mxu0 0.0
  %998 = vmatprep.subr.mxu0 0.0
  %999 = vmatpush2.msra.mxu0 0.0
  %1000 = vmatprep.subr.mxu0 0.0
  %1001 = vmatpush2.msra.mxu0 0.0
  %1002 = vmatprep.mubr.f32.mxu0 0.0
  %1003 = vmatmul.mubr.f32.gmra.mxu0 %v937
  %v1004 = vpop.f32.mrf.mxu0
  %v1005 = vadd.f32 %v81, %v1004
  %v1006 = vpop.f32.mrf.mxu0
  %v1007 = vadd.f32 %v85, %v1006
  %1008 = vdwg.mxu0
  %1009 = vmatprep.subr.mxu0 0.0
  %1010 = vmatpush1.msra.mxu0 %v74
  %1011 = vmatprep.subr.mxu0 0.0
  %1012 = vmatpush1.msra.mxu0 %v71
  %1013 = vmatprep.subr.mxu0 0.0
  %1014 = vmatpush1.msra.mxu0 %v68
  %1015 = vmatprep.subr.mxu0 0.0
  %1016 = vmatpush1.msra.mxu0 %v65
  %1017 = vmatprep.subr.mxu0 0.0
  %1018 = vmatpush1.msra.mxu0 %v62
  %1019 = vmatprep.subr.mxu0 0.0
  %1020 = vmatpush1.msra.mxu0 %v59
  %1021 = vmatprep.subr.mxu0 0.0
  %1022 = vmatpush1.msra.mxu0 %v56
  %1023 = vmatprep.subr.mxu0 0.0
  %1024 = vmatpush1.msra.mxu0 %v53
  %1025 = vmatprep.subr.mxu0 0.0
  %1026 = vmatpush1.msra.mxu0 %v50
  %1027 = vmatprep.subr.mxu0 0.0
  %1028 = vmatpush1.msra.mxu0 %v47
  %1029 = vmatprep.subr.mxu0 0.0
  %1030 = vmatpush1.msra.mxu0 %v44
  %1031 = vmatprep.subr.mxu0 0.0
  %1032 = vmatpush1.msra.mxu0 %v41
  %1033 = vmatprep.subr.mxu0 0.0
  %1034 = vmatpush1.msra.mxu0 %v38
  %1035 = vmatprep.subr.mxu0 0.0
  %1036 = vmatpush1.msra.mxu0 %v35
  %1037 = vmatprep.subr.mxu0 0.0
  %1038 = vmatpush1.msra.mxu0 %v32
  %1039 = vmatprep.subr.mxu0 0.0
  %1040 = vmatpush1.msra.mxu0 %v29
  %1041 = vmatprep.subr.mxu0 0.0
  %1042 = vmatpush2.msra.mxu0 0.0
  %1043 = vmatprep.subr.mxu0 0.0
  %1044 = vmatpush2.msra.mxu0 0.0
  %1045 = vmatprep.subr.mxu0 0.0
  %1046 = vmatpush2.msra.mxu0 0.0
  %1047 = vmatprep.subr.mxu0 0.0
  %1048 = vmatpush2.msra.mxu0 0.0
  %1049 = vmatprep.subr.mxu0 0.0
  %1050 = vmatpush2.msra.mxu0 0.0
  %1051 = vmatprep.subr.mxu0 0.0
  %1052 = vmatpush2.msra.mxu0 0.0
  %1053 = vmatprep.subr.mxu0 0.0
  %1054 = vmatpush2.msra.mxu0 0.0
  %1055 = vmatprep.subr.mxu0 0.0
  %1056 = vmatpush2.msra.mxu0 0.0
  %1057 = vmatprep.subr.mxu0 0.0
  %1058 = vmatpush2.msra.mxu0 0.0
  %1059 = vmatprep.subr.mxu0 0.0
  %1060 = vmatpush2.msra.mxu0 0.0
  %1061 = vmatprep.subr.mxu0 0.0
  %1062 = vmatpush2.msra.mxu0 0.0
  %1063 = vmatprep.subr.mxu0 0.0
  %1064 = vmatpush2.msra.mxu0 0.0
  %1065 = vmatprep.subr.mxu0 0.0
  %1066 = vmatpush2.msra.mxu0 0.0
  %1067 = vmatprep.subr.mxu0 0.0
  %1068 = vmatpush2.msra.mxu0 0.0
  %1069 = vmatprep.subr.mxu0 0.0
  %1070 = vmatpush2.msra.mxu0 0.0
  %1071 = vmatprep.subr.mxu0 0.0
  %1072 = vmatpush2.msra.mxu0 0.0
  %1073 = vmatprep.mubr.f32.mxu0 0.0
  %1074 = vmatmul.mubr.f32.gmra.mxu0 %v937
  %v1075 = vpop.f32.mrf.mxu0
  %v1076 = vadd.f32 %v89, %v1075
  %v1077 = vpop.f32.mrf.mxu0
  %1078 = vdwg.mxu0
  %v1079 = vadd.f32 %v932, %v1005
  %v1080 = vadd.f32 %v933, %v1007
  %v1081 = vxor.u32 %v1079, 2147483648
  %v1082 = vxor.u32 %v1080, 2147483648
  %v1083 = vmul.f32 %v1081, 1.442695
  %v1084 = vpow.pop %v1083
  %v1085 = vmul.f32 %v1082, 1.442695
  %v1086 = vpow.pop %v1085
  %v1087 = vadd.f32 %v1084, 1.0
  %v1088 = vadd.f32 %v1086, 1.0
  %v1089 = vrcp.pop %v1087
  %v1090 = vmul.f32 1.0, %v1089
  %v1091 = vrcp.pop %v1088
  %v1092 = vmul.f32 1.0, %v1091
  %v1093 = vmul.f32 %v1090, %v1076
  %v1094 = vadd.f32 %v934, %v1093
  %v1095 = vtanh.pop %v1094
  %v1096 = vsub.f32 1.0, %v1092
  %v1097 = vmul.f32 %v1096, %v1095
  %v1098 = vmul.f32 %v1092, %v937
  %v1099 = vadd.f32 %v1097, %v1098
  %s1100 = scalar_lea.vmem %s0, 144
  %v1101 = vld [vmem:[%s1100] sm:$0xff]
  %v1102 = vld [vmem:[%s1100 + $0x8] sm:$0xff]
  %v1103 = vld [vmem:[%s1100 + $0x10] sm:$0xff]
  %s1104 = scalar_lea.vmem %s1, 48
  %v1105 = vld [vmem:[%s1104] sm:$0xff]
  %v1106 = vmul.f32 %v1099, %v1105
  %1107 = vmatprep.subr.mxu0 %v73
  %1108 = vmatpush1.msra.mxu0 %v72
  %1109 = vmatprep.subr.mxu0 %v70
  %1110 = vmatpush1.msra.mxu0 %v69
  %1111 = vmatprep.subr.mxu0 %v67
  %1112 = vmatpush1.msra.mxu0 %v66
  %1113 = vmatprep.subr.mxu0 %v64
  %1114 = vmatpush1.msra.mxu0 %v63
  %1115 = vmatprep.subr.mxu0 %v61
  %1116 = vmatpush1.msra.mxu0 %v60
  %1117 = vmatprep.subr.mxu0 %v58
  %1118 = vmatpush1.msra.mxu0 %v57
  %1119 = vmatprep.subr.mxu0 %v55
  %1120 = vmatpush1.msra.mxu0 %v54
  %1121 = vmatprep.subr.mxu0 %v52
  %1122 = vmatpush1.msra.mxu0 %v51
  %1123 = vmatprep.subr.mxu0 %v49
  %1124 = vmatpush1.msra.mxu0 %v48
  %1125 = vmatprep.subr.mxu0 %v46
  %1126 = vmatpush1.msra.mxu0 %v45
  %1127 = vmatprep.subr.mxu0 %v43
  %1128 = vmatpush1.msra.mxu0 %v42
  %1129 = vmatprep.subr.mxu0 %v40
  %1130 = vmatpush1.msra.mxu0 %v39
  %1131 = vmatprep.subr.mxu0 %v37
  %1132 = vmatpush1.msra.mxu0 %v36
  %1133 = vmatprep.subr.mxu0 %v34
  %1134 = vmatpush1.msra.mxu0 %v33
  %1135 = vmatprep.subr.mxu0 %v31
  %1136 = vmatpush1.msra.mxu0 %v30
  %1137 = vmatprep.subr.mxu0 %v28
  %1138 = vmatpush1.msra.mxu0 %v27
  %1139 = vmatprep.subr.mxu0 0.0
  %1140 = vmatpush2.msra.mxu0 0.0
  %1141 = vmatprep.subr.mxu0 0.0
  %1142 = vmatpush2.msra.mxu0 0.0
  %1143 = vmatprep.subr.mxu0 0.0
  %1144 = vmatpush2.msra.mxu0 0.0
  %1145 = vmatprep.subr.mxu0 0.0
  %1146 = vmatpush2.msra.mxu0 0.0
  %1147 = vmatprep.subr.mxu0 0.0
  %1148 = vmatpush2.msra.mxu0 0.0
  %1149 = vmatprep.subr.mxu0 0.0
  %1150 = vmatpush2.msra.mxu0 0.0
  %1151 = vmatprep.subr.mxu0 0.0
  %1152 = vmatpush2.msra.mxu0 0.0
  %1153 = vmatprep.subr.mxu0 0.0
  %1154 = vmatpush2.msra.mxu0 0.0
  %1155 = vmatprep.subr.mxu0 0.0
  %1156 = vmatpush2.msra.mxu0 0.0
  %1157 = vmatprep.subr.mxu0 0.0
  %1158 = vmatpush2.msra.mxu0 0.0
  %1159 = vmatprep.subr.mxu0 0.0
  %1160 = vmatpush2.msra.mxu0 0.0
  %1161 = vmatprep.subr.mxu0 0.0
  %1162 = vmatpush2.msra.mxu0 0.0
  %1163 = vmatprep.subr.mxu0 0.0
  %1164 = vmatpush2.msra.mxu0 0.0
  %1165 = vmatprep.subr.mxu0 0.0
  %1166 = vmatpush2.msra.mxu0 0.0
  %1167 = vmatprep.subr.mxu0 0.0
  %1168 = vmatpush2.msra.mxu0 0.0
  %1169 = vmatprep.subr.mxu0 0.0
  %1170 = vmatpush2.msra.mxu0 0.0
  %1171 = vmatprep.mubr.f32.mxu0 0.0
  %1172 = vmatmul.mubr.f32.gmra.mxu0 %v1106
  %v1173 = vpop.f32.mrf.mxu0
  %v1174 = vadd.f32 %v81, %v1173
  %v1175 = vpop.f32.mrf.mxu0
  %v1176 = vadd.f32 %v85, %v1175
  %1177 = vdwg.mxu0
  %1178 = vmatprep.subr.mxu0 0.0
  %1179 = vmatpush1.msra.mxu0 %v74
  %1180 = vmatprep.subr.mxu0 0.0
  %1181 = vmatpush1.msra.mxu0 %v71
  %1182 = vmatprep.subr.mxu0 0.0
  %1183 = vmatpush1.msra.mxu0 %v68
  %1184 = vmatprep.subr.mxu0 0.0
  %1185 = vmatpush1.msra.mxu0 %v65
  %1186 = vmatprep.subr.mxu0 0.0
  %1187 = vmatpush1.msra.mxu0 %v62
  %1188 = vmatprep.subr.mxu0 0.0
  %1189 = vmatpush1.msra.mxu0 %v59
  %1190 = vmatprep.subr.mxu0 0.0
  %1191 = vmatpush1.msra.mxu0 %v56
  %1192 = vmatprep.subr.mxu0 0.0
  %1193 = vmatpush1.msra.mxu0 %v53
  %1194 = vmatprep.subr.mxu0 0.0
  %1195 = vmatpush1.msra.mxu0 %v50
  %1196 = vmatprep.subr.mxu0 0.0
  %1197 = vmatpush1.msra.mxu0 %v47
  %1198 = vmatprep.subr.mxu0 0.0
  %1199 = vmatpush1.msra.mxu0 %v44
  %1200 = vmatprep.subr.mxu0 0.0
  %1201 = vmatpush1.msra.mxu0 %v41
  %1202 = vmatprep.subr.mxu0 0.0
  %1203 = vmatpush1.msra.mxu0 %v38
  %1204 = vmatprep.subr.mxu0 0.0
  %1205 = vmatpush1.msra.mxu0 %v35
  %1206 = vmatprep.subr.mxu0 0.0
  %1207 = vmatpush1.msra.mxu0 %v32
  %1208 = vmatprep.subr.mxu0 0.0
  %1209 = vmatpush1.msra.mxu0 %v29
  %1210 = vmatprep.subr.mxu0 0.0
  %1211 = vmatpush2.msra.mxu0 0.0
  %1212 = vmatprep.subr.mxu0 0.0
  %1213 = vmatpush2.msra.mxu0 0.0
  %1214 = vmatprep.subr.mxu0 0.0
  %1215 = vmatpush2.msra.mxu0 0.0
  %1216 = vmatprep.subr.mxu0 0.0
  %1217 = vmatpush2.msra.mxu0 0.0
  %1218 = vmatprep.subr.mxu0 0.0
  %1219 = vmatpush2.msra.mxu0 0.0
  %1220 = vmatprep.subr.mxu0 0.0
  %1221 = vmatpush2.msra.mxu0 0.0
  %1222 = vmatprep.subr.mxu0 0.0
  %1223 = vmatpush2.msra.mxu0 0.0
  %1224 = vmatprep.subr.mxu0 0.0
  %1225 = vmatpush2.msra.mxu0 0.0
  %1226 = vmatprep.subr.mxu0 0.0
  %1227 = vmatpush2.msra.mxu0 0.0
  %1228 = vmatprep.subr.mxu0 0.0
  %1229 = vmatpush2.msra.mxu0 0.0
  %1230 = vmatprep.subr.mxu0 0.0
  %1231 = vmatpush2.msra.mxu0 0.0
  %1232 = vmatprep.subr.mxu0 0.0
  %1233 = vmatpush2.msra.mxu0 0.0
  %1234 = vmatprep.subr.mxu0 0.0
  %1235 = vmatpush2.msra.mxu0 0.0
  %1236 = vmatprep.subr.mxu0 0.0
  %1237 = vmatpush2.msra.mxu0 0.0
  %1238 = vmatprep.subr.mxu0 0.0
  %1239 = vmatpush2.msra.mxu0 0.0
  %1240 = vmatprep.subr.mxu0 0.0
  %1241 = vmatpush2.msra.mxu0 0.0
  %1242 = vmatprep.mubr.f32.mxu0 0.0
  %1243 = vmatmul.mubr.f32.gmra.mxu0 %v1106
  %v1244 = vpop.f32.mrf.mxu0
  %v1245 = vadd.f32 %v89, %v1244
  %v1246 = vpop.f32.mrf.mxu0
  %1247 = vdwg.mxu0
  %v1248 = vadd.f32 %v1101, %v1174
  %v1249 = vadd.f32 %v1102, %v1176
  %v1250 = vxor.u32 %v1248, 2147483648
  %v1251 = vxor.u32 %v1249, 2147483648
  %v1252 = vmul.f32 %v1250, 1.442695
  %v1253 = vpow.pop %v1252
  %v1254 = vmul.f32 %v1251, 1.442695
  %v1255 = vpow.pop %v1254
  %v1256 = vadd.f32 %v1253, 1.0
  %v1257 = vadd.f32 %v1255, 1.0
  %v1258 = vrcp.pop %v1256
  %v1259 = vmul.f32 1.0, %v1258
  %v1260 = vrcp.pop %v1257
  %v1261 = vmul.f32 1.0, %v1260
  %v1262 = vmul.f32 %v1259, %v1245
  %v1263 = vadd.f32 %v1103, %v1262
  %v1264 = vtanh.pop %v1263
  %v1265 = vsub.f32 1.0, %v1261
  %v1266 = vmul.f32 %v1265, %v1264
  %v1267 = vmul.f32 %v1261, %v1106
  %v1268 = vadd.f32 %v1266, %v1267
  %s1269 = scalar_lea.vmem %s0, 168
  %v1270 = vld [vmem:[%s1269] sm:$0xff]
  %v1271 = vld [vmem:[%s1269 + $0x8] sm:$0xff]
  %v1272 = vld [vmem:[%s1269 + $0x10] sm:$0xff]
  %s1273 = scalar_lea.vmem %s1, 56
  %v1274 = vld [vmem:[%s1273] sm:$0xff]
  %v1275 = vmul.f32 %v1268, %v1274
  %1276 = vmatprep.subr.mxu0 %v73
  %1277 = vmatpush1.msra.mxu0 %v72
  %1278 = vmatprep.subr.mxu0 %v70
  %1279 = vmatpush1.msra.mxu0 %v69
  %1280 = vmatprep.subr.mxu0 %v67
  %1281 = vmatpush1.msra.mxu0 %v66
  %1282 = vmatprep.subr.mxu0 %v64
  %1283 = vmatpush1.msra.mxu0 %v63
  %1284 = vmatprep.subr.mxu0 %v61
  %1285 = vmatpush1.msra.mxu0 %v60
  %1286 = vmatprep.subr.mxu0 %v58
  %1287 = vmatpush1.msra.mxu0 %v57
  %1288 = vmatprep.subr.mxu0 %v55
  %1289 = vmatpush1.msra.mxu0 %v54
  %1290 = vmatprep.subr.mxu0 %v52
  %1291 = vmatpush1.msra.mxu0 %v51
  %1292 = vmatprep.subr.mxu0 %v49
  %1293 = vmatpush1.msra.mxu0 %v48
  %1294 = vmatprep.subr.mxu0 %v46
  %1295 = vmatpush1.msra.mxu0 %v45
  %1296 = vmatprep.subr.mxu0 %v43
  %1297 = vmatpush1.msra.mxu0 %v42
  %1298 = vmatprep.subr.mxu0 %v40
  %1299 = vmatpush1.msra.mxu0 %v39
  %1300 = vmatprep.subr.mxu0 %v37
  %1301 = vmatpush1.msra.mxu0 %v36
  %1302 = vmatprep.subr.mxu0 %v34
  %1303 = vmatpush1.msra.mxu0 %v33
  %1304 = vmatprep.subr.mxu0 %v31
  %1305 = vmatpush1.msra.mxu0 %v30
  %1306 = vmatprep.subr.mxu0 %v28
  %1307 = vmatpush1.msra.mxu0 %v27
  %1308 = vmatprep.subr.mxu0 0.0
  %1309 = vmatpush2.msra.mxu0 0.0
  %1310 = vmatprep.subr.mxu0 0.0
  %1311 = vmatpush2.msra.mxu0 0.0
  %1312 = vmatprep.subr.mxu0 0.0
  %1313 = vmatpush2.msra.mxu0 0.0
  %1314 = vmatprep.subr.mxu0 0.0
  %1315 = vmatpush2.msra.mxu0 0.0
  %1316 = vmatprep.subr.mxu0 0.0
  %1317 = vmatpush2.msra.mxu0 0.0
  %1318 = vmatprep.subr.mxu0 0.0
  %1319 = vmatpush2.msra.mxu0 0.0
  %1320 = vmatprep.subr.mxu0 0.0
  %1321 = vmatpush2.msra.mxu0 0.0
  %1322 = vmatprep.subr.mxu0 0.0
  %1323 = vmatpush2.msra.mxu0 0.0
  %1324 = vmatprep.subr.mxu0 0.0
  %1325 = vmatpush2.msra.mxu0 0.0
  %1326 = vmatprep.subr.mxu0 0.0
  %1327 = vmatpush2.msra.mxu0 0.0
  %1328 = vmatprep.subr.mxu0 0.0
  %1329 = vmatpush2.msra.mxu0 0.0
  %1330 = vmatprep.subr.mxu0 0.0
  %1331 = vmatpush2.msra.mxu0 0.0
  %1332 = vmatprep.subr.mxu0 0.0
  %1333 = vmatpush2.msra.mxu0 0.0
  %1334 = vmatprep.subr.mxu0 0.0
  %1335 = vmatpush2.msra.mxu0 0.0
  %1336 = vmatprep.subr.mxu0 0.0
  %1337 = vmatpush2.msra.mxu0 0.0
  %1338 = vmatprep.subr.mxu0 0.0
  %1339 = vmatpush2.msra.mxu0 0.0
  %1340 = vmatprep.mubr.f32.mxu0 0.0
  %1341 = vmatmul.mubr.f32.gmra.mxu0 %v1275
  %v1342 = vpop.f32.mrf.mxu0
  %v1343 = vadd.f32 %v81, %v1342
  %v1344 = vpop.f32.mrf.mxu0
  %v1345 = vadd.f32 %v85, %v1344
  %1346 = vdwg.mxu0
  %1347 = vmatprep.subr.mxu0 0.0
  %1348 = vmatpush1.msra.mxu0 %v74
  %1349 = vmatprep.subr.mxu0 0.0
  %1350 = vmatpush1.msra.mxu0 %v71
  %1351 = vmatprep.subr.mxu0 0.0
  %1352 = vmatpush1.msra.mxu0 %v68
  %1353 = vmatprep.subr.mxu0 0.0
  %1354 = vmatpush1.msra.mxu0 %v65
  %1355 = vmatprep.subr.mxu0 0.0
  %1356 = vmatpush1.msra.mxu0 %v62
  %1357 = vmatprep.subr.mxu0 0.0
  %1358 = vmatpush1.msra.mxu0 %v59
  %1359 = vmatprep.subr.mxu0 0.0
  %1360 = vmatpush1.msra.mxu0 %v56
  %1361 = vmatprep.subr.mxu0 0.0
  %1362 = vmatpush1.msra.mxu0 %v53
  %1363 = vmatprep.subr.mxu0 0.0
  %1364 = vmatpush1.msra.mxu0 %v50
  %1365 = vmatprep.subr.mxu0 0.0
  %1366 = vmatpush1.msra.mxu0 %v47
  %1367 = vmatprep.subr.mxu0 0.0
  %1368 = vmatpush1.msra.mxu0 %v44
  %1369 = vmatprep.subr.mxu0 0.0
  %1370 = vmatpush1.msra.mxu0 %v41
  %1371 = vmatprep.subr.mxu0 0.0
  %1372 = vmatpush1.msra.mxu0 %v38
  %1373 = vmatprep.subr.mxu0 0.0
  %1374 = vmatpush1.msra.mxu0 %v35
  %1375 = vmatprep.subr.mxu0 0.0
  %1376 = vmatpush1.msra.mxu0 %v32
  %1377 = vmatprep.subr.mxu0 0.0
  %1378 = vmatpush1.msra.mxu0 %v29
  %1379 = vmatprep.subr.mxu0 0.0
  %1380 = vmatpush2.msra.mxu0 0.0
  %1381 = vmatprep.subr.mxu0 0.0
  %1382 = vmatpush2.msra.mxu0 0.0
  %1383 = vmatprep.subr.mxu0 0.0
  %1384 = vmatpush2.msra.mxu0 0.0
  %1385 = vmatprep.subr.mxu0 0.0
  %1386 = vmatpush2.msra.mxu0 0.0
  %1387 = vmatprep.subr.mxu0 0.0
  %1388 = vmatpush2.msra.mxu0 0.0
  %1389 = vmatprep.subr.mxu0 0.0
  %1390 = vmatpush2.msra.mxu0 0.0
  %1391 = vmatprep.subr.mxu0 0.0
  %1392 = vmatpush2.msra.mxu0 0.0
  %1393 = vmatprep.subr.mxu0 0.0
  %1394 = vmatpush2.msra.mxu0 0.0
  %1395 = vmatprep.subr.mxu0 0.0
  %1396 = vmatpush2.msra.mxu0 0.0
  %1397 = vmatprep.subr.mxu0 0.0
  %1398 = vmatpush2.msra.mxu0 0.0
  %1399 = vmatprep.subr.mxu0 0.0
  %1400 = vmatpush2.msra.mxu0 0.0
  %1401 = vmatprep.subr.mxu0 0.0
  %1402 = vmatpush2.msra.mxu0 0.0
  %1403 = vmatprep.subr.mxu0 0.0
  %1404 = vmatpush2.msra.mxu0 0.0
  %1405 = vmatprep.subr.mxu0 0.0
  %1406 = vmatpush2.msra.mxu0 0.0
  %1407 = vmatprep.subr.mxu0 0.0
  %1408 = vmatpush2.msra.mxu0 0.0
  %1409 = vmatprep.subr.mxu0 0.0
  %1410 = vmatpush2.msra.mxu0 0.0
  %1411 = vmatprep.mubr.f32.mxu0 0.0
  %1412 = vmatmul.mubr.f32.gmra.mxu0 %v1275
  %v1413 = vpop.f32.mrf.mxu0
  %v1414 = vadd.f32 %v89, %v1413
  %v1415 = vpop.f32.mrf.mxu0
  %1416 = vdwg.mxu0
  %v1417 = vadd.f32 %v1270, %v1343
  %v1418 = vadd.f32 %v1271, %v1345
  %v1419 = vxor.u32 %v1417, 2147483648
  %v1420 = vxor.u32 %v1418, 2147483648
  %v1421 = vmul.f32 %v1419, 1.442695
  %v1422 = vpow.pop %v1421
  %v1423 = vmul.f32 %v1420, 1.442695
  %v1424 = vpow.pop %v1423
  %v1425 = vadd.f32 %v1422, 1.0
  %v1426 = vadd.f32 %v1424, 1.0
  %v1427 = vrcp.pop %v1425
  %v1428 = vmul.f32 1.0, %v1427
  %v1429 = vrcp.pop %v1426
  %v1430 = vmul.f32 1.0, %v1429
  %v1431 = vmul.f32 %v1428, %v1414
  %v1432 = vadd.f32 %v1272, %v1431
  %v1433 = vtanh.pop %v1432
  %v1434 = vsub.f32 1.0, %v1430
  %v1435 = vmul.f32 %v1434, %v1433
  %v1436 = vmul.f32 %v1430, %v1275
  %v1437 = vadd.f32 %v1435, %v1436
  %v1438 = vld [vmem:[%s4] sm:$0xff]
  %v1439 = vadd.f32 %v1437, %v1438
  %v1440 = vld [vmem:[%s5] sm:$0xff]
  %v1441 = vld [vmem:[%s5 + $0x8] sm:$0xff]
  %v1442 = vld [vmem:[%s5 + $0x10] sm:$0xff]
  %v1443 = vld [vmem:[%s5 + $0x18] sm:$0xff]
  %v1444 = vld [vmem:[%s5 + $0x20] sm:$0xff]
  %v1445 = vld [vmem:[%s5 + $0x28] sm:$0xff]
  %v1446 = vld [vmem:[%s5 + $0x30] sm:$0xff]
  %v1447 = vld [vmem:[%s5 + $0x38] sm:$0xff]
  %v1448 = vld [vmem:[%s5 + $0x40] sm:$0xff]
  %v1449 = vld [vmem:[%s5 + $0x48] sm:$0xff]
  %v1450 = vld [vmem:[%s5 + $0x50] sm:$0xff]
  %v1451 = vld [vmem:[%s5 + $0x58] sm:$0xff]
  %v1452 = vld [vmem:[%s5 + $0x60] sm:$0xff]
  %v1453 = vld [vmem:[%s5 + $0x68] sm:$0xff]
  %v1454 = vld [vmem:[%s5 + $0x70] sm:$0xff]
  %v1455 = vld [vmem:[%s5 + $0x78] sm:$0xff]
  %1456 = vmatprep.subr.mxu0 0.0
  %1457 = vmatpush1.msra.mxu0 %v1455
  %1458 = vmatprep.subr.mxu0 0.0
  %1459 = vmatpush1.msra.mxu0 %v1454
  %1460 = vmatprep.subr.mxu0 0.0
  %1461 = vmatpush1.msra.mxu0 %v1453
  %1462 = vmatprep.subr.mxu0 0.0
  %1463 = vmatpush1.msra.mxu0 %v1452
  %1464 = vmatprep.subr.mxu0 0.0
  %1465 = vmatpush1.msra.mxu0 %v1451
  %1466 = vmatprep.subr.mxu0 0.0
  %1467 = vmatpush1.msra.mxu0 %v1450
  %1468 = vmatprep.subr.mxu0 0.0
  %1469 = vmatpush1.msra.mxu0 %v1449
  %1470 = vmatprep.subr.mxu0 0.0
  %1471 = vmatpush1.msra.mxu0 %v1448
  %1472 = vmatprep.subr.mxu0 0.0
  %1473 = vmatpush1.msra.mxu0 %v1447
  %1474 = vmatprep.subr.mxu0 0.0
  %1475 = vmatpush1.msra.mxu0 %v1446
  %1476 = vmatprep.subr.mxu0 0.0
  %1477 = vmatpush1.msra.mxu0 %v1445
  %1478 = vmatprep.subr.mxu0 0.0
  %1479 = vmatpush1.msra.mxu0 %v1444
  %1480 = vmatprep.subr.mxu0 0.0
  %1481 = vmatpush1.msra.mxu0 %v1443
  %1482 = vmatprep.subr.mxu0 0.0
  %1483 = vmatpush1.msra.mxu0 %v1442
  %1484 = vmatprep.subr.mxu0 0.0
  %1485 = vmatpush1.msra.mxu0 %v1441
  %1486 = vmatprep.subr.mxu0 0.0
  %1487 = vmatpush1.msra.mxu0 %v1440
  %1488 = vmatprep.subr.mxu0 0.0
  %1489 = vmatpush2.msra.mxu0 0.0
  %1490 = vmatprep.subr.mxu0 0.0
  %1491 = vmatpush2.msra.mxu0 0.0
  %1492 = vmatprep.subr.mxu0 0.0
  %1493 = vmatpush2.msra.mxu0 0.0
  %1494 = vmatprep.subr.mxu0 0.0
  %1495 = vmatpush2.msra.mxu0 0.0
  %1496 = vmatprep.subr.mxu0 0.0
  %1497 = vmatpush2.msra.mxu0 0.0
  %1498 = vmatprep.subr.mxu0 0.0
  %1499 = vmatpush2.msra.mxu0 0.0
  %1500 = vmatprep.subr.mxu0 0.0
  %1501 = vmatpush2.msra.mxu0 0.0
  %1502 = vmatprep.subr.mxu0 0.0
  %1503 = vmatpush2.msra.mxu0 0.0
  %1504 = vmatprep.subr.mxu0 0.0
  %1505 = vmatpush2.msra.mxu0 0.0
  %1506 = vmatprep.subr.mxu0 0.0
  %1507 = vmatpush2.msra.mxu0 0.0
  %1508 = vmatprep.subr.mxu0 0.0
  %1509 = vmatpush2.msra.mxu0 0.0
  %1510 = vmatprep.subr.mxu0 0.0
  %1511 = vmatpush2.msra.mxu0 0.0
  %1512 = vmatprep.subr.mxu0 0.0
  %1513 = vmatpush2.msra.mxu0 0.0
  %1514 = vmatprep.subr.mxu0 0.0
  %1515 = vmatpush2.msra.mxu0 0.0
  %1516 = vmatprep.subr.mxu0 0.0
  %1517 = vmatpush2.msra.mxu0 0.0
  %1518 = vmatprep.subr.mxu0 0.0
  %1519 = vmatpush2.msra.mxu0 0.0
  %1520 = vmatprep.mubr.f32.mxu0 0.0
  %1521 = vmatmul.mubr.f32.gmra.mxu0 %v1439
  %v1522 = vpop.f32.mrf.mxu0
  %v1523 = vadd.f32 0.0, %v1522
  %v1524 = vpop.f32.mrf.mxu0
  %1525 = vdwg.mxu0
  %1526 = vst [vmem:[%s6] sm:$0xff] %v1523
  // Predicated region
  $region26: #{rnn_exp_decay_forward.1} parent=0 // pred_check
    _
  $region27: #{rnn_exp_decay_forward.1} parent=0 // pred_check_branch
    %1528 = sbr.rel (0) target = $region29
  $region28: #{rnn_exp_decay_forward.1} parent=0 // pred_region
    _
  $region29: #{rnn_exp_decay_forward.1} parent=0 // pred_fallthru
    _
  // Predicated region
  $region30: #{rnn_exp_decay_forward.1} parent=0 // pred_check
    _
  $region31: #{rnn_exp_decay_forward.1} parent=0 // pred_check_branch
    %1530 = sbr.rel (0) target = $region33
  $region32: #{rnn_exp_decay_forward.1} parent=0 // pred_region
    _
  $region33: #{rnn_exp_decay_forward.1} parent=0 // pred_fallthru
    _

</llo_original>
